<compile_context>
chip_gen: v7x
topology: tpu7x:2x2x1
jax: 0.10.0
libtpu: 0.0.40
codegen_flags: <defaults>
</compile_context>

<pallas_src>
from functools import partial

import jax
import jax.numpy as jnp
from jax.experimental import pallas as pl
from jax.experimental.pallas import tpu as pltpu


def _round_up(x, m):
    return ((x + m - 1) // m) * m


def _ctclip_head_kernel(txt_ref, img_ref, wt_ref, wi_ref, scale_ref,
                        sim_ref, pool_ref, *, n_tokens, tile_n):
    # txt_ref  : (tile_b, dim_text)            CLS-token text embeddings
    # img_ref  : (tile_b, tile_n, dim_image)   one token-tile of encoded image tokens
    # wt_ref   : (dim_text, dim_latent)        to_text_latent weight (no bias)
    # wi_ref   : (dim_image, dim_latent)       to_visual_latent weight (no bias)
    # scale_ref: (1,) f32 in SMEM              exp(temperature), hoisted to the wrapper
    # sim_ref  : (tile_b, 1)
    # pool_ref : (tile_b, dim_image) f32 scratch — running token sum
    k = pl.program_id(1)
    n_k = pl.num_programs(1)

    @pl.when(k == 0)
    def _init():
        pool_ref[...] = jnp.zeros_like(pool_ref)

    rem = n_tokens % tile_n  # static python int
    if rem == 0:
        # f32 accumulation without materialising an f32 copy of the tile.
        pool_ref[...] += jnp.sum(img_ref[...], axis=1, dtype=jnp.float32)
    else:
        @pl.when(k < n_k - 1)
        def _full_tile():
            pool_ref[...] += jnp.sum(img_ref[...], axis=1, dtype=jnp.float32)

        @pl.when(k == n_k - 1)
        def _ragged_tile():
            # mask out-of-range tokens of the ragged last token tile
            tok = jax.lax.broadcasted_iota(jnp.int32, img_ref.shape, 1)
            img = jnp.where(tok < rem, img_ref[...].astype(jnp.float32), 0.0)
            pool_ref[...] += jnp.sum(img, axis=1)

    @pl.when(k == n_k - 1)
    def _epilogue():
        # to_text_latent / to_visual_latent (bias-free) with f32 MXU accumulation.
        txt_lat = jnp.dot(txt_ref[...], wt_ref[...],
                          preferred_element_type=jnp.float32)
        pooled = pool_ref[...] * jnp.float32(1.0 / n_tokens)   # torch.mean(enc_image, dim=1)
        img_lat = jnp.dot(pooled, wi_ref[...].astype(jnp.float32),
                          preferred_element_type=jnp.float32)

        # compute_similarity: l2norm both, per-row dot, * exp(temperature).
        # F.normalize clamps the norm at eps=1e-12 -> clamp ||.||^2 at 1e-24.
        eps2 = jnp.float32(1e-24)
        t_sq = jnp.sum(txt_lat * txt_lat, axis=-1, keepdims=True)
        i_sq = jnp.sum(img_lat * img_lat, axis=-1, keepdims=True)
        dot = jnp.sum(txt_lat * img_lat, axis=-1, keepdims=True)
        inv = jax.lax.rsqrt(jnp.maximum(t_sq, eps2)) * jax.lax.rsqrt(jnp.maximum(i_sq, eps2))
        sim_ref[...] = (dot * inv * scale_ref[0]).astype(sim_ref.dtype)


def ctclip_similarity(enc_text, enc_image, w_text, w_image, temperature, *,
                      tile_b=None, tile_n=None,
                      vmem_budget_bytes=48 * 1024 * 1024):
    """Fused CTCLIP head in a single pallas_call.

    enc_text : (B, S, dim_text)   output tokens of the external text encoder
    enc_image: (B, N, dim_image)  encoded image tokens (return_encoded_tokens=True)
    Returns sim: (B,) float32.
    """
    B, _, dim_text = enc_text.shape
    Bi, n_tokens, dim_image = enc_image.shape
    assert B == Bi
    dim_latent = w_text.shape[1]
    assert w_text.shape == (dim_text, dim_latent)
    assert w_image.shape == (dim_image, dim_latent)

    # CLS-token slice in the wrapper (cheap HBM slice) so the kernel never reads
    # the unused S-1 text token rows.
    text_cls = enc_text[:, 0, :]

    # Batch tile: as large as reasonable (MXU/M utilisation, per-step overhead),
    # but keep >= 2 batch tiles when possible so the "parallel" axis shards
    # across both TensorCores on v7x.
    if tile_b is None:
        if B > 128:
            tile_b = 128
        elif B >= 16:
            tile_b = _round_up(-(-B // 2), 8)
        else:
            tile_b = _round_up(max(B, 1), 8)

    # Token tile: bound the (double-buffered) image block by a VMEM budget so
    # the kernel scales with token count and still fits v7x's 64 MiB VMEM.
    itemsize = jnp.dtype(enc_image.dtype).itemsize
    if tile_n is None:
        per_token = 2 * tile_b * dim_image * itemsize            # x2: double buffering
        cap = max(8, (((vmem_budget_bytes // 2) // per_token) // 8) * 8)
        tile_n = n_tokens if n_tokens <= cap else cap

    n_b_tiles = -(-B // tile_b)
    n_n_tiles = -(-n_tokens // tile_n)

    # exp(temperature) hoisted out of the kernel; single f32 scalar in SMEM.
    scale = jnp.exp(jnp.asarray(temperature, jnp.float32)).reshape(1)

    # Rough VMEM accounting -> scoped limit with headroom, capped for v7x.
    # NOTE: the two resident weights could be single-buffered
    # (pipeline_mode=pl.Buffered(1)) for ~2 MiB extra headroom; omitted here.
    est = (2 * tile_b * tile_n * dim_image * itemsize
           + 2 * tile_b * dim_text * jnp.dtype(text_cls.dtype).itemsize
           + 2 * dim_text * dim_latent * jnp.dtype(w_text.dtype).itemsize
           + 2 * dim_image * dim_latent * jnp.dtype(w_image.dtype).itemsize
           + tile_b * dim_image * 4
           + 6 * tile_b * max(dim_latent, dim_image) * 4)
    vmem_limit = int(min(64 * 1024 * 1024, max(32 * 1024 * 1024, int(est * 1.5))))

    kernel = partial(_ctclip_head_kernel, n_tokens=n_tokens, tile_n=tile_n)

    sim = pl.pallas_call(
        kernel,
        out_shape=jax.ShapeDtypeStruct((B, 1), jnp.float32),
        grid_spec=pltpu.PrefetchScalarGridSpec(
            num_scalar_prefetch=0,
            grid=(n_b_tiles, n_n_tiles),
            in_specs=[
                pl.BlockSpec((tile_b, dim_text), lambda i, k: (i, 0)),
                pl.BlockSpec((tile_b, tile_n, dim_image), lambda i, k: (i, k, 0)),
                pl.BlockSpec((dim_text, dim_latent), lambda i, k: (0, 0)),   # resident weight
                pl.BlockSpec((dim_image, dim_latent), lambda i, k: (0, 0)),  # resident weight
                pl.BlockSpec(memory_space=pltpu.MemorySpace.SMEM),           # exp(temperature)
            ],
            out_specs=pl.BlockSpec((tile_b, 1), lambda i, k: (i, 0)),
            scratch_shapes=[pltpu.VMEM((tile_b, dim_image), jnp.float32)],   # token-sum pool
        ),
        compiler_params=pltpu.CompilerParams(
            dimension_semantics=("parallel", "arbitrary"),   # batch shards across TCs
            vmem_limit_bytes=vmem_limit,
        ),
    )(text_cls, enc_image, w_text, w_image, scale)
    return sim[:, 0]


class CTCLIP:
    """JAX/Pallas port of the CTCLIP contrastive head (encoders are external)."""

    def __init__(self, dim_text=512, dim_image=512, dim_latent=512, *, key):
        kt, ki = jax.random.split(key)
        # nn.Linear(dim_text, dim_latent, bias=False) / nn.Linear(dim_image, dim_latent, bias=False)
        self.w_text = jax.random.normal(kt, (dim_text, dim_latent), jnp.float32) * 0.02
        self.w_image = jax.random.normal(ki, (dim_image, dim_latent), jnp.float32) * 0.02
        self.temperature = jnp.float32(1.0)        # nn.Parameter(torch.tensor(1.0))

    def __call__(self, enc_text, enc_image, *, tile_b=None, tile_n=None):
        return ctclip_similarity(enc_text, enc_image, self.w_text, self.w_image,
                                 self.temperature, tile_b=tile_b, tile_n=tile_n)


if __name__ == "__main__":
    key = jax.random.PRNGKey(0)
    k_model, k_text, k_img = jax.random.split(key, 3)

    # Small shapes, but with the real (lane-dense) CTCLIP feature widths.
    B, S, N = 8, 16, 32
    dim_text = dim_image = dim_latent = 512

    model = CTCLIP(dim_text, dim_image, dim_latent, key=k_model)
    enc_text = jax.random.normal(k_text, (B, S, dim_text), dtype=jnp.float32)
    enc_image = jax.random.normal(k_img, (B, N, dim_image), dtype=jnp.float32)

    # tile_n=8 so the demo exercises the token-tiled accumulation path (4 steps).
    sim = model(enc_text, enc_image, tile_n=8)
    sim = jax.block_until_ready(sim)

    # Pure-JAX reference of the same forward head.
    txt_lat = enc_text[:, 0, :] @ model.w_text
    img_lat = jnp.mean(enc_image, axis=1) @ model.w_image

    def l2n(t):
        return t / jnp.maximum(jnp.linalg.norm(t, axis=-1, keepdims=True), 1e-12)

    ref = jnp.sum(l2n(txt_lat) * l2n(img_lat), axis=-1) * jnp.exp(model.temperature)

    assert sim.shape == (B,)
    assert jnp.allclose(sim, ref, atol=5e-3, rtol=5e-3), (sim, ref)
    print("KERNEL_OK")
</pallas_src>

<mosaic_0001>
module attributes {stable_mosaic.version = 11 : i64} {
  func.func @_ctclip_head_kernel(%arg0: i32, %arg1: i32, %arg2: memref<8x512xf32, #tpu.memory_space<vmem>>, %arg3: memref<8x8x512xf32, #tpu.memory_space<vmem>>, %arg4: memref<512x512xf32, #tpu.memory_space<vmem>>, %arg5: memref<512x512xf32, #tpu.memory_space<vmem>>, %arg6: memref<1xf32, #tpu.memory_space<smem>>, %arg7: memref<8x1xf32, #tpu.memory_space<vmem>>, %arg8: memref<8x512xf32, #tpu.memory_space<vmem>>) attributes {dimension_semantics = [#tpu.dimension_semantics<parallel>, #tpu.dimension_semantics<arbitrary>], iteration_bounds = array<i64: 1, 4>, scalar_prefetch = 0 : i64, scratch_operands = 1 : i64, tpu.core_type = #tpu.core_type<tc>, window_params = [{transform_indices = @transform_0, window_bounds = array<i64: 8, 512>}, {transform_indices = @transform_1, window_bounds = array<i64: 8, 8, 512>}, {pipeline_mode = #tpu.pipeline_mode<synchronous>, transform_indices = @transform_2, window_bounds = array<i64: 512, 512>}, {pipeline_mode = #tpu.pipeline_mode<synchronous>, transform_indices = @transform_3, window_bounds = array<i64: 512, 512>}, {transform_indices = @transform_4, window_bounds = array<i64: 1>}, {transform_indices = @transform_5, window_bounds = array<i64: 8, 1>}]} {
    %c0_i32 = arith.constant 0 : i32
    %0 = arith.cmpi eq, %arg1, %c0_i32 : i32
    %1 = arith.extui %0 : i1 to i32
    %c0_i32_0 = arith.constant 0 : i32
    %2 = arith.cmpi ne, %1, %c0_i32_0 : i32
    scf.if %2 {
      %cst_8 = arith.constant 0.000000e+00 : f32
      %11 = vector.broadcast %cst_8 : f32 to vector<8x512xf32>
      %c0_9 = arith.constant 0 : index
      %c0_10 = arith.constant 0 : index
      %12 = vector.load %arg8[%c0_9, %c0_10] : memref<8x512xf32, #tpu.memory_space<vmem>>, vector<8x512xf32>
      tpu.vector_store %arg8[%c0_9, %c0_10], %11 {strides = array<i32>} : memref<8x512xf32, #tpu.memory_space<vmem>>, vector<8x512xf32>,
    } else {
    }
    %c0 = arith.constant 0 : index
    %c0_1 = arith.constant 0 : index
    %3 = vector.load %arg8[%c0, %c0_1] : memref<8x512xf32, #tpu.memory_space<vmem>>, vector<8x512xf32>
    %c0_2 = arith.constant 0 : index
    %c0_3 = arith.constant 0 : index
    %c0_4 = arith.constant 0 : index
    %4 = vector.load %arg3[%c0_2, %c0_3, %c0_4] : memref<8x8x512xf32, #tpu.memory_space<vmem>>, vector<8x8x512xf32>
    %cst = arith.constant dense<0.000000e+00> : vector<8x512xf32>
    %5 = vector.multi_reduction <add>, %4, %cst [1] : vector<8x8x512xf32> to vector<8x512xf32>
    %6 = arith.addf %3, %5 : vector<8x512xf32>
    %c0_5 = arith.constant 0 : index
    %c0_6 = arith.constant 0 : index
    %7 = vector.load %arg8[%c0_5, %c0_6] : memref<8x512xf32, #tpu.memory_space<vmem>>, vector<8x512xf32>
    tpu.vector_store %arg8[%c0_5, %c0_6], %6 {strides = array<i32>} : memref<8x512xf32, #tpu.memory_space<vmem>>, vector<8x512xf32>,
    %c3_i32 = arith.constant 3 : i32
    %8 = arith.cmpi eq, %arg1, %c3_i32 : i32
    %9 = arith.extui %8 : i1 to i32
    %c0_i32_7 = arith.constant 0 : i32
    %10 = arith.cmpi ne, %9, %c0_i32_7 : i32
    scf.if %10 {
      %c0_8 = arith.constant 0 : index
      %c0_9 = arith.constant 0 : index
      %11 = vector.load %arg2[%c0_8, %c0_9] : memref<8x512xf32, #tpu.memory_space<vmem>>, vector<8x512xf32>
      %c0_10 = arith.constant 0 : index
      %c0_11 = arith.constant 0 : index
      %12 = vector.load %arg4[%c0_10, %c0_11] : memref<512x512xf32, #tpu.memory_space<vmem>>, vector<512x512xf32>
      %cst_12 = arith.constant dense<0.000000e+00> : vector<8x512xf32>
      %13 = tpu.matmul %11, %12, %cst_12 {dimension_numbers = #tpu.dot_dimension_numbers<[1], [0], [0], [1], [0, 0, 1, 1], [], []>} : vector<8x512xf32>, vector<512x512xf32>, vector<8x512xf32> -> vector<8x512xf32>
      %c0_13 = arith.constant 0 : index
      %c0_14 = arith.constant 0 : index
      %14 = vector.load %arg8[%c0_13, %c0_14] : memref<8x512xf32, #tpu.memory_space<vmem>>, vector<8x512xf32>
      %cst_15 = arith.constant 3.125000e-02 : f32
      %15 = vector.broadcast %cst_15 : f32 to vector<8x512xf32>
      %16 = arith.mulf %14, %15 : vector<8x512xf32>
      %c0_16 = arith.constant 0 : index
      %c0_17 = arith.constant 0 : index
      %17 = vector.load %arg5[%c0_16, %c0_17] : memref<512x512xf32, #tpu.memory_space<vmem>>, vector<512x512xf32>
      %cst_18 = arith.constant dense<0.000000e+00> : vector<8x512xf32>
      %18 = tpu.matmul %16, %17, %cst_18 {dimension_numbers = #tpu.dot_dimension_numbers<[1], [0], [0], [1], [0, 0, 1, 1], [], []>} : vector<8x512xf32>, vector<512x512xf32>, vector<8x512xf32> -> vector<8x512xf32>
      %19 = arith.mulf %13, %13 : vector<8x512xf32>
      %cst_19 = arith.constant dense<0.000000e+00> : vector<8xf32>
      %20 = vector.multi_reduction <add>, %19, %cst_19 [1] : vector<8x512xf32> to vector<8xf32>
      %21 = vector.shape_cast %20 : vector<8xf32> to vector<8x1xf32>
      %22 = arith.mulf %18, %18 : vector<8x512xf32>
      %cst_20 = arith.constant dense<0.000000e+00> : vector<8xf32>
      %23 = vector.multi_reduction <add>, %22, %cst_20 [1] : vector<8x512xf32> to vector<8xf32>
      %24 = vector.shape_cast %23 : vector<8xf32> to vector<8x1xf32>
      %25 = arith.mulf %13, %18 : vector<8x512xf32>
      %cst_21 = arith.constant dense<0.000000e+00> : vector<8xf32>
      %26 = vector.multi_reduction <add>, %25, %cst_21 [1] : vector<8x512xf32> to vector<8xf32>
      %27 = vector.shape_cast %26 : vector<8xf32> to vector<8x1xf32>
      %cst_22 = arith.constant 1.000000e-24 : f32
      %28 = vector.broadcast %cst_22 : f32 to vector<8x1xf32>
      %29 = arith.maximumf %21, %28 : vector<8x1xf32>
      %30 = math.rsqrt %29 : vector<8x1xf32>
      %cst_23 = arith.constant 1.000000e-24 : f32
      %31 = vector.broadcast %cst_23 : f32 to vector<8x1xf32>
      %32 = arith.maximumf %24, %31 : vector<8x1xf32>
      %33 = math.rsqrt %32 : vector<8x1xf32>
      %34 = arith.mulf %30, %33 : vector<8x1xf32>
      %35 = arith.mulf %27, %34 : vector<8x1xf32>
      %c0_24 = arith.constant 0 : index
      %36 = memref.load %arg6[%c0_24] : memref<1xf32, #tpu.memory_space<smem>>
      %37 = vector.broadcast %36 : f32 to vector<8x1xf32>
      %38 = arith.mulf %35, %37 : vector<8x1xf32>
      %c0_25 = arith.constant 0 : index
      %c0_26 = arith.constant 0 : index
      %39 = vector.load %arg7[%c0_25, %c0_26] : memref<8x1xf32, #tpu.memory_space<vmem>>, vector<8x1xf32>
      tpu.vector_store %arg7[%c0_25, %c0_26], %38 {strides = array<i32>} : memref<8x1xf32, #tpu.memory_space<vmem>>, vector<8x1xf32>,
    } else {
    }
    return
  }
  func.func @transform_0(%arg0: i32, %arg1: i32) -> (i32, i32) {
    %c0_i32 = arith.constant 0 : i32
    %c0_i32_0 = arith.constant 0 : i32
    return %arg0, %c0_i32 : i32, i32
  }
  func.func @transform_1(%arg0: i32, %arg1: i32) -> (i32, i32, i32) {
    %c0_i32 = arith.constant 0 : i32
    %c0_i32_0 = arith.constant 0 : i32
    return %arg0, %arg1, %c0_i32 : i32, i32, i32
  }
  func.func @transform_2(%arg0: i32, %arg1: i32) -> (i32, i32) {
    %c0_i32 = arith.constant 0 : i32
    %c0_i32_0 = arith.constant 0 : i32
    %c0_i32_1 = arith.constant 0 : i32
    return %c0_i32, %c0_i32_0 : i32, i32
  }
  func.func @transform_3(%arg0: i32, %arg1: i32) -> (i32, i32) {
    %c0_i32 = arith.constant 0 : i32
    %c0_i32_0 = arith.constant 0 : i32
    %c0_i32_1 = arith.constant 0 : i32
    return %c0_i32, %c0_i32_0 : i32, i32
  }
  func.func @transform_4(%arg0: i32, %arg1: i32) -> i32 {
    %c0_i32 = arith.constant 0 : i32
    %c0_i32_0 = arith.constant 0 : i32
    return %c0_i32 : i32
  }
  func.func @transform_5(%arg0: i32, %arg1: i32) -> (i32, i32) {
    %c0_i32 = arith.constant 0 : i32
    %c0_i32_0 = arith.constant 0 : i32
    return %arg0, %c0_i32 : i32, i32
  }
}

</mosaic_0001>

<llo_original>
// kernel: tpu_custom_call.1
$region0: #{tpu_custom_call.1}
  #allocation0 [shape = 'u32[]', space=smem, size = 0x4, offset = 0x4, fixed_abs, tag = 'smem constant byte address 0x4 - core index']
  #allocation1 [shape = 'u32[144,128]{1,0:T(1,128)}', space=vmem, size = 0x12000, scoped, tag = 'internal scratch']
  #allocation2 [shape = 'f32[8,512]{1,0:T(8,128)}', space=vmem, size = 0x4000, scoped, tag = 'scratch operand']
  #allocation3 [shape = 'f32[1]{0:T(128)S(6)}', space=smem, size = 0x200, scoped, tag = 'scoped memory for tpu_custom_call.1']
  %s0 = inlined_call_operand.hbm [shape: f32[8,512], index: 0, kind: input, shape index: {}]
  %s1 = inlined_call_operand.hbm [shape: f32[8,32,512], index: 1, kind: input, shape index: {}]
  %s2 = inlined_call_operand.hbm [shape: f32[512,512], index: 2, kind: input, shape index: {}]
  %s3 = inlined_call_operand.hbm [shape: f32[512,512], index: 3, kind: input, shape index: {}]
  %s4 = inlined_call_operand.<no memory space> [shape: f32[1], index: 4, kind: input, shape index: {}]
  %s5 = inlined_call_operand.vmem [shape: f32[8,1], index: 5, kind: output, shape index: {}]
  %s6 = sld [smem:[#allocation0]]
  $region77: #{tpu_custom_call.1} parent=0
    _
  %s8 = ssub.s32 1, %s6
  %s9 = scalar_select 0, %s8, %s6
  %10 = sst [smem:[#allocation3]] %s4
  $region1: #{tpu_custom_call.1} parent=0
    #allocation4 [shape = 'u8[16384]{0}', space=vmem, size = 0x4000, scoped, tag = 'input window, operand 0, single buffered']
    #allocation5 [shape = 's32[2]{0}', space=sflag, size = 0x8, scoped, tag = 'scoped memory for tpu_custom_call.1']
    #allocation6 [shape = 'u8[262144]{0}', space=vmem, size = 0x40000, scoped, tag = 'input window, operand 1']
    #allocation7 [shape = 's32[2]{0}', space=sflag, size = 0x8, scoped, tag = 'scoped memory for tpu_custom_call.1']
    #allocation8 [shape = 'u8[1048576]{0}', space=vmem, size = 0x100000, scoped, tag = 'input window, operand 2, single buffered']
    #allocation9 [shape = 'u8[1048576]{0}', space=vmem, size = 0x100000, scoped, tag = 'input window, operand 3, single buffered']
    #allocation10 [shape = 's32[1]{0}', space=sflag, size = 0x4, scoped, tag = 'scoped memory for tpu_custom_call.1']
    %11 = vsyncpa [#allocation5], 0
    %12 = vsyncpa [#allocation7], 0
    %s13 = scalar_lea.sflag [#allocation7], 1
    %14 = vsyncpa %s13, 0
    %15 = vsyncpa [#allocation10], 0
    loop: start=0, step=1, limit=6
    $region2: #{tpu_custom_call.1} parent=1 // loop_pre_header
      _
    $region3: #{tpu_custom_call.1} parent=1 // loop_header
      %s17 = sphi 0, %s21
      %p18 = scmp.ge.s32.totalorder %s17, 6
      %s24 = sphi 0, %s36
      %s25 = sphi 0, %s32
      %s26 = sphi 0, %s24
      %s27 = sphi 0, %s25
      %s28 = sphi 0, %s26
      %s29 = sphi 0, %s27
      %s39 = sphi 0, %s41
      %s42 = sphi 0, %s39
      %s43 = sphi 0, %s42
      %s59 = sphi 0, %s43
      %s67 = sphi 0, %s69
      %s70 = sphi 0, %s67
      %s71 = sphi 0, %s70
      %s87 = sphi 0, %s71
      %s91 = sphi 0, %s91
      %s93 = sphi 0, %s91
      %s94 = sphi 0, %s93
      %s108 = sphi 0, %s94
      %s112 = sphi 0, %s112
      %s114 = sphi 0, %s112
      %s115 = sphi 0, %s114
      %s129 = sphi 0, %s115
      %s133 = sphi 0, %s133
      %s135 = sphi 0, %s133
      %s136 = sphi 0, %s135
      %s150 = sphi 0, %s136
      %s156 = sphi 0, %s158
      %s159 = sphi 0, %s156
      %s160 = sphi 0, %s159
      %s176 = sphi 0, %s160
    $region4: #{tpu_custom_call.1} parent=1 // loop_header_branch
      %20 = sbr.rel (%p18) target = $region8
    $region5: #{tpu_custom_call.1} parent=1 // loop_body
      %s22 = ssub.s32 %s17, 1
      %s23 = ssub.s32 %s17, 2
      %s30 = sadd.s32 1, %s25
      %p31 = scmp.ge.s32.totalorder %s30, 4
      %s32 = scalar_select %p31, 0, %s30
      %s33 = sadd.s32 1, %s24
      %s34 = scalar_select %p31, %s33, %s24
      %p35 = scmp.ge.s32.totalorder %s34, 1
      %s36 = scalar_select %p35, 0, %s34
      %s37 = ssub.s32 %s24, %s36
      %p38 = scmp.eq.s32.totalorder %s37, 0
      %s40 = sadd.s32 %s39, 1
      %s41 = scalar_select %p38, %s39, %s40
      %p44 = pneg %p38
      %p45 = scmp.eq.s32.totalorder %s17, 3
      %p46 = por %p44, %p45
      %p47 = scmp.ne.s32.totalorder %s39, %s42
      %p48 = scmp.eq.s32.totalorder %s17, 0
      %p49 = por %p47, %p48
      %p50 = scmp.ne.s32.totalorder %s39, %s42
      %p51 = scmp.eq.s32.totalorder %s22, 3
      %p52 = por %p50, %p51
      %p53 = scmp.ne.s32.totalorder %s42, %s43
      %p54 = scmp.eq.s32.totalorder %s22, 0
      %p55 = por %p53, %p54
      %p56 = scmp.ne.s32.totalorder %s42, %s43
      %p57 = scmp.eq.s32.totalorder %s23, 3
      %p58 = por %p56, %p57
      %p60 = scmp.ne.s32.totalorder %s43, %s59
      %p61 = scmp.eq.s32.totalorder %s23, 0
      %p62 = por %p60, %p61
      %s63 = ssub.s32 %s24, %s36
      %s64 = ssub.s32 %s25, %s32
      %s65 = sor.u32 %s63, %s64
      %p66 = scmp.eq.s32.totalorder %s65, 0
      %s68 = sadd.s32 %s67, 1
      %s69 = scalar_select %p66, %s67, %s68
      %p72 = pneg %p66
      %p73 = scmp.eq.s32.totalorder %s17, 3
      %p74 = por %p72, %p73
      %p75 = scmp.ne.s32.totalorder %s67, %s70
      %p76 = scmp.eq.s32.totalorder %s17, 0
      %p77 = por %p75, %p76
      %p78 = scmp.ne.s32.totalorder %s67, %s70
      %p79 = scmp.eq.s32.totalorder %s22, 3
      %p80 = por %p78, %p79
      %p81 = scmp.ne.s32.totalorder %s70, %s71
      %p82 = scmp.eq.s32.totalorder %s22, 0
      %p83 = por %p81, %p82
      %p84 = scmp.ne.s32.totalorder %s70, %s71
      %p85 = scmp.eq.s32.totalorder %s23, 3
      %p86 = por %p84, %p85
      %p88 = scmp.ne.s32.totalorder %s71, %s87
      %p89 = scmp.eq.s32.totalorder %s23, 0
      %p90 = por %p88, %p89
      %s92 = sadd.s32 %s91, 1
      %p95 = scmp.eq.s32.totalorder %s17, 3
      %p96 = scmp.ne.s32.totalorder %s91, %s93
      %p97 = scmp.eq.s32.totalorder %s17, 0
      %p98 = por %p96, %p97
      %p99 = scmp.ne.s32.totalorder %s91, %s93
      %p100 = scmp.eq.s32.totalorder %s22, 3
      %p101 = por %p99, %p100
      %p102 = scmp.ne.s32.totalorder %s93, %s94
      %p103 = scmp.eq.s32.totalorder %s22, 0
      %p104 = por %p102, %p103
      %p105 = scmp.ne.s32.totalorder %s93, %s94
      %p106 = scmp.eq.s32.totalorder %s23, 3
      %p107 = por %p105, %p106
      %p109 = scmp.ne.s32.totalorder %s94, %s108
      %p110 = scmp.eq.s32.totalorder %s23, 0
      %p111 = por %p109, %p110
      %s113 = sadd.s32 %s112, 1
      %p116 = scmp.eq.s32.totalorder %s17, 3
      %p117 = scmp.ne.s32.totalorder %s112, %s114
      %p118 = scmp.eq.s32.totalorder %s17, 0
      %p119 = por %p117, %p118
      %p120 = scmp.ne.s32.totalorder %s112, %s114
      %p121 = scmp.eq.s32.totalorder %s22, 3
      %p122 = por %p120, %p121
      %p123 = scmp.ne.s32.totalorder %s114, %s115
      %p124 = scmp.eq.s32.totalorder %s22, 0
      %p125 = por %p123, %p124
      %p126 = scmp.ne.s32.totalorder %s114, %s115
      %p127 = scmp.eq.s32.totalorder %s23, 3
      %p128 = por %p126, %p127
      %p130 = scmp.ne.s32.totalorder %s115, %s129
      %p131 = scmp.eq.s32.totalorder %s23, 0
      %p132 = por %p130, %p131
      %s134 = sadd.s32 %s133, 1
      %p137 = scmp.eq.s32.totalorder %s17, 3
      %p138 = scmp.ne.s32.totalorder %s133, %s135
      %p139 = scmp.eq.s32.totalorder %s17, 0
      %p140 = por %p138, %p139
      %p141 = scmp.ne.s32.totalorder %s133, %s135
      %p142 = scmp.eq.s32.totalorder %s22, 3
      %p143 = por %p141, %p142
      %p144 = scmp.ne.s32.totalorder %s135, %s136
      %p145 = scmp.eq.s32.totalorder %s22, 0
      %p146 = por %p144, %p145
      %p147 = scmp.ne.s32.totalorder %s135, %s136
      %p148 = scmp.eq.s32.totalorder %s23, 3
      %p149 = por %p147, %p148
      %p151 = scmp.ne.s32.totalorder %s136, %s150
      %p152 = scmp.eq.s32.totalorder %s23, 0
      %p153 = por %p151, %p152
      %s154 = ssub.s32 %s24, %s36
      %p155 = scmp.eq.s32.totalorder %s154, 0
      %s157 = sadd.s32 %s156, 1
      %s158 = scalar_select %p155, %s156, %s157
      %p161 = pneg %p155
      %p162 = scmp.eq.s32.totalorder %s17, 3
      %p163 = por %p161, %p162
      %p164 = scmp.ne.s32.totalorder %s156, %s159
      %p165 = scmp.eq.s32.totalorder %s17, 0
      %p166 = por %p164, %p165
      %p167 = scmp.ne.s32.totalorder %s156, %s159
      %p168 = scmp.eq.s32.totalorder %s22, 3
      %p169 = por %p167, %p168
      %p170 = scmp.ne.s32.totalorder %s159, %s160
      %p171 = scmp.eq.s32.totalorder %s22, 0
      %p172 = por %p170, %p171
      %p173 = scmp.ne.s32.totalorder %s159, %s160
      %p174 = scmp.eq.s32.totalorder %s23, 3
      %p175 = por %p173, %p174
      %p177 = scmp.ne.s32.totalorder %s160, %s176
      %p178 = scmp.eq.s32.totalorder %s23, 0
      %p179 = por %p177, %p178
      %p180 = scmp.le.s32.totalorder 1, %s17
      %p181 = scmp.lt.s32.totalorder %s17, 5
      %p182 = pnand %p180, %p181
      %p183 = pneg %p182
      // Predicated region
      $region9: #{tpu_custom_call.1} parent=5 // pred_check
        _
      $region10: #{tpu_custom_call.1} parent=5 // pred_check_branch
        %185 = sbr.rel (%p182) target = $region12
      $region11: #{tpu_custom_call.1} parent=5 // pred_region
        %s186 = ssub.s32 %s17, 1
        // Predicated region
        $region13: #{tpu_custom_call.1} parent=11 // pred_check
          %p187 = pneg %p55
        $region14: #{tpu_custom_call.1} parent=11 // pred_check_branch
          %189 = sbr.rel (%p187) target = $region16
        $region15: #{tpu_custom_call.1} parent=11 // pred_region
          %s191 = ssub.s32 512, 512
          %192 = vsyncadd [#allocation5], %s191
          %s193 = smul.addr %s26, 4
          %s194 = smul.addr %s193, 128
          %s195 = scalar_lea.hbm %s0, %s194
          %s197 = sshll.u32 [#allocation4], 4
          %s198 = int_to_ptr.vmem [resolvable:$true] %s197
          %200 = dma.hbm_to_vmem [thread:$0]  %s195, 512, %s198, [#allocation5]
        $region16: #{tpu_custom_call.1} parent=11 // pred_fallthru
          _
        // Predicated region
        $region17: #{tpu_custom_call.1} parent=11 // pred_check
          %p201 = pneg %p104
        $region18: #{tpu_custom_call.1} parent=11 // pred_check_branch
          %203 = sbr.rel (%p201) target = $region20
        $region19: #{tpu_custom_call.1} parent=11 // pred_region
          %s205 = ssub.s32 32768, 32768
          %206 = vsyncadd [#allocation7], %s205
          %s207 = sshll.u32 [#allocation8], 4
          %s208 = int_to_ptr.vmem [resolvable:$true] %s207
          %213 = dma.hbm_to_vmem [thread:$0]  %s2, 32768, %s208, [#allocation7], 512, 512, 32
        $region20: #{tpu_custom_call.1} parent=11 // pred_fallthru
          _
        // Predicated region
        $region21: #{tpu_custom_call.1} parent=11 // pred_check
          %p214 = pneg %p125
        $region22: #{tpu_custom_call.1} parent=11 // pred_check_branch
          %216 = sbr.rel (%p214) target = $region24
        $region23: #{tpu_custom_call.1} parent=11 // pred_region
          %s218 = ssub.s32 32768, 32768
          %219 = vsyncadd [#allocation10], %s218
          %s220 = sshll.u32 [#allocation9], 4
          %s221 = int_to_ptr.vmem [resolvable:$true] %s220
          %226 = dma.hbm_to_vmem [thread:$0]  %s3, 32768, %s221, [#allocation10], 512, 512, 32
        $region24: #{tpu_custom_call.1} parent=11 // pred_fallthru
          _
        // Predicated region
        $region25: #{tpu_custom_call.1} parent=11 // pred_check
          %p227 = pneg %p146
        $region26: #{tpu_custom_call.1} parent=11 // pred_check_branch
          %229 = sbr.rel (%p227) target = $region28
        $region27: #{tpu_custom_call.1} parent=11 // pred_region
          _
        $region28: #{tpu_custom_call.1} parent=11 // pred_fallthru
          _
      $region12: #{tpu_custom_call.1} parent=5 // pred_fallthru
        _
      %p230 = scmp.lt.s32.totalorder %s17, 4
      // Predicated region
      $region29: #{tpu_custom_call.1} parent=5 // pred_check
        %p231 = pneg %p230
      $region30: #{tpu_custom_call.1} parent=5 // pred_check_branch
        %233 = sbr.rel (%p231) target = $region32
      $region31: #{tpu_custom_call.1} parent=5 // pred_region
        // Predicated region
        $region33: #{tpu_custom_call.1} parent=31 // pred_check
          %p234 = pneg %p77
        $region34: #{tpu_custom_call.1} parent=31 // pred_check_branch
          %236 = sbr.rel (%p234) target = $region36
        $region35: #{tpu_custom_call.1} parent=31 // pred_region
          %s237 = sand.u32 %s17, 1
          %s238 = scalar_lea.sflag [#allocation7], %s237
          %s239 = sand.u32 %s67, 1
          %s240 = smul.addr %s239, 256
          %s241 = scalar_lea.vmem [#allocation6], %s240
          %s242 = smul.u32 8, %s24
          %s244 = ssub.s32 4096, 4096
          %245 = vsyncadd %s238, %s244
          %s246 = smul.addr %s25, 4
          %s247 = smul.addr %s242, 16
          %s248 = sadd.s32 %s246, %s247
          %s249 = smul.addr %s248, 128
          %s250 = scalar_lea.hbm %s1, %s249
          %s251 = sshll.u32 %s241, 4
          %s252 = int_to_ptr.vmem [resolvable:$true] %s251
          %257 = dma.hbm_to_vmem [thread:$0]  %s250, 4096, %s252, %s238, 2048, 512, 32
        $region36: #{tpu_custom_call.1} parent=31 // pred_fallthru
          _
      $region32: #{tpu_custom_call.1} parent=5 // pred_fallthru
        _
      %p258 = scmp.le.s32.totalorder 1, %s17
      %p259 = scmp.lt.s32.totalorder %s17, 5
      %p260 = pnand %p258, %p259
      %p261 = pneg %p260
      // Predicated region
      $region37: #{tpu_custom_call.1} parent=5 // pred_check
        _
      $region38: #{tpu_custom_call.1} parent=5 // pred_check_branch
        %263 = sbr.rel (%p260) target = $region40
      $region39: #{tpu_custom_call.1} parent=5 // pred_region
        %s264 = ssub.s32 %s17, 1
        // Predicated region
        $region41: #{tpu_custom_call.1} parent=39 // pred_check
          %p265 = pneg %p55
        $region42: #{tpu_custom_call.1} parent=39 // pred_check_branch
          %267 = sbr.rel (%p265) target = $region44
        $region43: #{tpu_custom_call.1} parent=39 // pred_region
          %268 = dma.done [#allocation5], 512
        $region44: #{tpu_custom_call.1} parent=39 // pred_fallthru
          _
        %s269 = sand.u32 %s22, 1
        %s270 = scalar_lea.sflag [#allocation7], %s269
        %s271 = sand.u32 %s70, 1
        %s272 = smul.addr %s271, 256
        %s273 = scalar_lea.vmem [#allocation6], %s272
        // Predicated region
        $region45: #{tpu_custom_call.1} parent=39 // pred_check
          %p274 = pneg %p83
        $region46: #{tpu_custom_call.1} parent=39 // pred_check_branch
          %276 = sbr.rel (%p274) target = $region48
        $region47: #{tpu_custom_call.1} parent=39 // pred_region
          %277 = dma.done %s270, 4096
        $region48: #{tpu_custom_call.1} parent=39 // pred_fallthru
          _
        // Predicated region
        $region49: #{tpu_custom_call.1} parent=39 // pred_check
          %p278 = pneg %p104
        $region50: #{tpu_custom_call.1} parent=39 // pred_check_branch
          %280 = sbr.rel (%p278) target = $region52
        $region51: #{tpu_custom_call.1} parent=39 // pred_region
          %281 = dma.done [#allocation7], 32768
        $region52: #{tpu_custom_call.1} parent=39 // pred_fallthru
          _
        // Predicated region
        $region53: #{tpu_custom_call.1} parent=39 // pred_check
          %p282 = pneg %p125
        $region54: #{tpu_custom_call.1} parent=39 // pred_check_branch
          %284 = sbr.rel (%p282) target = $region56
        $region55: #{tpu_custom_call.1} parent=39 // pred_region
          %285 = dma.done [#allocation10], 32768
        $region56: #{tpu_custom_call.1} parent=39 // pred_fallthru
          _
        %p286 = pneg %p55
        %p287 = pneg %p52
        %s288 = sand.u32 %s22, 1
        %s289 = scalar_lea.sflag [#allocation7], %s288
        %s290 = sand.u32 %s70, 1
        %s291 = smul.addr %s290, 256
        %s292 = scalar_lea.vmem [#allocation6], %s291
        %p293 = pneg %p83
        %p294 = pneg %p80
        %p295 = pneg %p104
        %p296 = pneg %p101
        %p297 = pneg %p125
        %p298 = pneg %p122
        %p299 = pneg %p146
        %p300 = pneg %p143
        %p301 = pneg %p172
        %p302 = pneg %p169
        %p303 = scmp.lt.s32.totalorder %s26, 0
        %s304 = scalar_select %p303, %s26, 0
        %s305 = smul.addr %s304, 8
        %s306 = scalar_lea.vmem %s5, %s305
        %s307 = smul.u32 8, %s26
        %p308 = scmp.lt.s32.totalorder %s26, 0
        %s309 = scalar_select %p308, %s26, 0
        %s310 = smul.addr %s309, 8
        %s311 = scalar_lea.vmem %s5, %s310
        %p312 = scmp.eq.s32.totalorder %s27, 0
        // Predicated region
        $region57: #{tpu_custom_call.1} parent=39 // pred_check
          %p313 = pneg %p312
        $region58: #{tpu_custom_call.1} parent=39 // pred_check_branch
          %315 = sbr.rel (%p313) target = $region60
        $region59: #{tpu_custom_call.1} parent=39 // pred_region
          %316 = vst [vmem:[#allocation2] sm:$0xff] 0.0
          %317 = vst [vmem:[#allocation2 + $0x8] sm:$0xff] 0.0
          %318 = vst [vmem:[#allocation2 + $0x10] sm:$0xff] 0.0
          %319 = vst [vmem:[#allocation2 + $0x18] sm:$0xff] 0.0
        $region60: #{tpu_custom_call.1} parent=39 // pred_fallthru
          _
        %v320 = vld [vmem:[#allocation2] sm:$0xff]
        %v321 = vld [vmem:[#allocation2 + $0x8] sm:$0xff]
        %v322 = vld [vmem:[#allocation2 + $0x10] sm:$0xff]
        %v323 = vld [vmem:[#allocation2 + $0x18] sm:$0xff]
        %v324 = vld [vmem:[%s273] sm:$0xff]
        %v325 = vld [vmem:[%s273 + $0x8] sm:$0xff]
        %v326 = vld [vmem:[%s273 + $0x10] sm:$0xff]
        %v327 = vld [vmem:[%s273 + $0x18] sm:$0xff]
        %v328 = vld [vmem:[%s273 + $0x20] sm:$0xff]
        %v329 = vld [vmem:[%s273 + $0x28] sm:$0xff]
        %v330 = vld [vmem:[%s273 + $0x30] sm:$0xff]
        %v331 = vld [vmem:[%s273 + $0x38] sm:$0xff]
        %v332 = vld [vmem:[%s273 + $0x40] sm:$0xff]
        %v333 = vld [vmem:[%s273 + $0x48] sm:$0xff]
        %v334 = vld [vmem:[%s273 + $0x50] sm:$0xff]
        %v335 = vld [vmem:[%s273 + $0x58] sm:$0xff]
        %v336 = vld [vmem:[%s273 + $0x60] sm:$0xff]
        %v337 = vld [vmem:[%s273 + $0x68] sm:$0xff]
        %v338 = vld [vmem:[%s273 + $0x70] sm:$0xff]
        %v339 = vld [vmem:[%s273 + $0x78] sm:$0xff]
        %v340 = vld [vmem:[%s273 + $0x80] sm:$0xff]
        %v341 = vld [vmem:[%s273 + $0x88] sm:$0xff]
        %v342 = vld [vmem:[%s273 + $0x90] sm:$0xff]
        %v343 = vld [vmem:[%s273 + $0x98] sm:$0xff]
        %v344 = vld [vmem:[%s273 + $0xa0] sm:$0xff]
        %v345 = vld [vmem:[%s273 + $0xa8] sm:$0xff]
        %v346 = vld [vmem:[%s273 + $0xb0] sm:$0xff]
        %v347 = vld [vmem:[%s273 + $0xb8] sm:$0xff]
        %v348 = vld [vmem:[%s273 + $0xc0] sm:$0xff]
        %v349 = vld [vmem:[%s273 + $0xc8] sm:$0xff]
        %v350 = vld [vmem:[%s273 + $0xd0] sm:$0xff]
        %v351 = vld [vmem:[%s273 + $0xd8] sm:$0xff]
        %v352 = vld [vmem:[%s273 + $0xe0] sm:$0xff]
        %v353 = vld [vmem:[%s273 + $0xe8] sm:$0xff]
        %v354 = vld [vmem:[%s273 + $0xf0] sm:$0xff]
        %v355 = vld [vmem:[%s273 + $0xf8] sm:$0xff]
        %v356 = vrot.slane %v324, 4
        %v357 = vadd.f32 %v324, %v356
        %v358 = vrot.slane %v357, 2
        %v359 = vadd.f32 %v357, %v358
        %v360 = vrot.slane %v359, 1
        %v361 = vadd.f32 %v359, %v360
        %v362 = vrot.slane %v325, 4
        %v363 = vadd.f32 %v325, %v362
        %v364 = vrot.slane %v363, 2
        %v365 = vadd.f32 %v363, %v364
        %v366 = vrot.slane %v365, 1
        %v367 = vadd.f32 %v365, %v366
        %v368 = vrot.slane %v326, 4
        %v369 = vadd.f32 %v326, %v368
        %v370 = vrot.slane %v369, 2
        %v371 = vadd.f32 %v369, %v370
        %v372 = vrot.slane %v371, 1
        %v373 = vadd.f32 %v371, %v372
        %v374 = vrot.slane %v327, 4
        %v375 = vadd.f32 %v327, %v374
        %v376 = vrot.slane %v375, 2
        %v377 = vadd.f32 %v375, %v376
        %v378 = vrot.slane %v377, 1
        %v379 = vadd.f32 %v377, %v378
        %v380 = vrot.slane %v328, 4
        %v381 = vadd.f32 %v328, %v380
        %v382 = vrot.slane %v381, 2
        %v383 = vadd.f32 %v381, %v382
        %v384 = vrot.slane %v383, 1
        %v385 = vadd.f32 %v383, %v384
        %v386 = vrot.slane %v329, 4
        %v387 = vadd.f32 %v329, %v386
        %v388 = vrot.slane %v387, 2
        %v389 = vadd.f32 %v387, %v388
        %v390 = vrot.slane %v389, 1
        %v391 = vadd.f32 %v389, %v390
        %v392 = vrot.slane %v330, 4
        %v393 = vadd.f32 %v330, %v392
        %v394 = vrot.slane %v393, 2
        %v395 = vadd.f32 %v393, %v394
        %v396 = vrot.slane %v395, 1
        %v397 = vadd.f32 %v395, %v396
        %v398 = vrot.slane %v331, 4
        %v399 = vadd.f32 %v331, %v398
        %v400 = vrot.slane %v399, 2
        %v401 = vadd.f32 %v399, %v400
        %v402 = vrot.slane %v401, 1
        %v403 = vadd.f32 %v401, %v402
        %v404 = vrot.slane %v332, 4
        %v405 = vadd.f32 %v332, %v404
        %v406 = vrot.slane %v405, 2
        %v407 = vadd.f32 %v405, %v406
        %v408 = vrot.slane %v407, 1
        %v409 = vadd.f32 %v407, %v408
        %v410 = vrot.slane %v333, 4
        %v411 = vadd.f32 %v333, %v410
        %v412 = vrot.slane %v411, 2
        %v413 = vadd.f32 %v411, %v412
        %v414 = vrot.slane %v413, 1
        %v415 = vadd.f32 %v413, %v414
        %v416 = vrot.slane %v334, 4
        %v417 = vadd.f32 %v334, %v416
        %v418 = vrot.slane %v417, 2
        %v419 = vadd.f32 %v417, %v418
        %v420 = vrot.slane %v419, 1
        %v421 = vadd.f32 %v419, %v420
        %v422 = vrot.slane %v335, 4
        %v423 = vadd.f32 %v335, %v422
        %v424 = vrot.slane %v423, 2
        %v425 = vadd.f32 %v423, %v424
        %v426 = vrot.slane %v425, 1
        %v427 = vadd.f32 %v425, %v426
        %v428 = vrot.slane %v336, 4
        %v429 = vadd.f32 %v336, %v428
        %v430 = vrot.slane %v429, 2
        %v431 = vadd.f32 %v429, %v430
        %v432 = vrot.slane %v431, 1
        %v433 = vadd.f32 %v431, %v432
        %v434 = vrot.slane %v337, 4
        %v435 = vadd.f32 %v337, %v434
        %v436 = vrot.slane %v435, 2
        %v437 = vadd.f32 %v435, %v436
        %v438 = vrot.slane %v437, 1
        %v439 = vadd.f32 %v437, %v438
        %v440 = vrot.slane %v338, 4
        %v441 = vadd.f32 %v338, %v440
        %v442 = vrot.slane %v441, 2
        %v443 = vadd.f32 %v441, %v442
        %v444 = vrot.slane %v443, 1
        %v445 = vadd.f32 %v443, %v444
        %v446 = vrot.slane %v339, 4
        %v447 = vadd.f32 %v339, %v446
        %v448 = vrot.slane %v447, 2
        %v449 = vadd.f32 %v447, %v448
        %v450 = vrot.slane %v449, 1
        %v451 = vadd.f32 %v449, %v450
        %v452 = vrot.slane %v340, 4
        %v453 = vadd.f32 %v340, %v452
        %v454 = vrot.slane %v453, 2
        %v455 = vadd.f32 %v453, %v454
        %v456 = vrot.slane %v455, 1
        %v457 = vadd.f32 %v455, %v456
        %v458 = vrot.slane %v341, 4
        %v459 = vadd.f32 %v341, %v458
        %v460 = vrot.slane %v459, 2
        %v461 = vadd.f32 %v459, %v460
        %v462 = vrot.slane %v461, 1
        %v463 = vadd.f32 %v461, %v462
        %v464 = vrot.slane %v342, 4
        %v465 = vadd.f32 %v342, %v464
        %v466 = vrot.slane %v465, 2
        %v467 = vadd.f32 %v465, %v466
        %v468 = vrot.slane %v467, 1
        %v469 = vadd.f32 %v467, %v468
        %v470 = vrot.slane %v343, 4
        %v471 = vadd.f32 %v343, %v470
        %v472 = vrot.slane %v471, 2
        %v473 = vadd.f32 %v471, %v472
        %v474 = vrot.slane %v473, 1
        %v475 = vadd.f32 %v473, %v474
        %v476 = vrot.slane %v344, 4
        %v477 = vadd.f32 %v344, %v476
        %v478 = vrot.slane %v477, 2
        %v479 = vadd.f32 %v477, %v478
        %v480 = vrot.slane %v479, 1
        %v481 = vadd.f32 %v479, %v480
        %v482 = vrot.slane %v345, 4
        %v483 = vadd.f32 %v345, %v482
        %v484 = vrot.slane %v483, 2
        %v485 = vadd.f32 %v483, %v484
        %v486 = vrot.slane %v485, 1
        %v487 = vadd.f32 %v485, %v486
        %v488 = vrot.slane %v346, 4
        %v489 = vadd.f32 %v346, %v488
        %v490 = vrot.slane %v489, 2
        %v491 = vadd.f32 %v489, %v490
        %v492 = vrot.slane %v491, 1
        %v493 = vadd.f32 %v491, %v492
        %v494 = vrot.slane %v347, 4
        %v495 = vadd.f32 %v347, %v494
        %v496 = vrot.slane %v495, 2
        %v497 = vadd.f32 %v495, %v496
        %v498 = vrot.slane %v497, 1
        %v499 = vadd.f32 %v497, %v498
        %v500 = vrot.slane %v348, 4
        %v501 = vadd.f32 %v348, %v500
        %v502 = vrot.slane %v501, 2
        %v503 = vadd.f32 %v501, %v502
        %v504 = vrot.slane %v503, 1
        %v505 = vadd.f32 %v503, %v504
        %v506 = vrot.slane %v349, 4
        %v507 = vadd.f32 %v349, %v506
        %v508 = vrot.slane %v507, 2
        %v509 = vadd.f32 %v507, %v508
        %v510 = vrot.slane %v509, 1
        %v511 = vadd.f32 %v509, %v510
        %v512 = vrot.slane %v350, 4
        %v513 = vadd.f32 %v350, %v512
        %v514 = vrot.slane %v513, 2
        %v515 = vadd.f32 %v513, %v514
        %v516 = vrot.slane %v515, 1
        %v517 = vadd.f32 %v515, %v516
        %v518 = vrot.slane %v351, 4
        %v519 = vadd.f32 %v351, %v518
        %v520 = vrot.slane %v519, 2
        %v521 = vadd.f32 %v519, %v520
        %v522 = vrot.slane %v521, 1
        %v523 = vadd.f32 %v521, %v522
        %v524 = vrot.slane %v352, 4
        %v525 = vadd.f32 %v352, %v524
        %v526 = vrot.slane %v525, 2
        %v527 = vadd.f32 %v525, %v526
        %v528 = vrot.slane %v527, 1
        %v529 = vadd.f32 %v527, %v528
        %v530 = vrot.slane %v353, 4
        %v531 = vadd.f32 %v353, %v530
        %v532 = vrot.slane %v531, 2
        %v533 = vadd.f32 %v531, %v532
        %v534 = vrot.slane %v533, 1
        %v535 = vadd.f32 %v533, %v534
        %v536 = vrot.slane %v354, 4
        %v537 = vadd.f32 %v354, %v536
        %v538 = vrot.slane %v537, 2
        %v539 = vadd.f32 %v537, %v538
        %v540 = vrot.slane %v539, 1
        %v541 = vadd.f32 %v539, %v540
        %v542 = vrot.slane %v355, 4
        %v543 = vadd.f32 %v355, %v542
        %v544 = vrot.slane %v543, 2
        %v545 = vadd.f32 %v543, %v544
        %v546 = vrot.slane %v545, 1
        %v547 = vadd.f32 %v545, %v546
        %vm580 = vcmask 1041409
        %v581 = vsel %vm580, %v385, %v361
        %vm582 = vcmask 1042434
        %v583 = vsel %vm582, %v409, %v581
        %vm584 = vcmask 1043459
        %v585 = vsel %vm584, %v433, %v583
        %vm586 = vcmask 1044484
        %v587 = vsel %vm586, %v457, %v585
        %vm588 = vcmask 1045509
        %v589 = vsel %vm588, %v481, %v587
        %vm590 = vcmask 1046534
        %v591 = vsel %vm590, %v505, %v589
        %vm592 = vcmask 1047559
        %v593 = vsel %vm592, %v529, %v591
        %v594 = vsel %vm580, %v391, %v367
        %v595 = vsel %vm582, %v415, %v594
        %v596 = vsel %vm584, %v439, %v595
        %v597 = vsel %vm586, %v463, %v596
        %v598 = vsel %vm588, %v487, %v597
        %v599 = vsel %vm590, %v511, %v598
        %v600 = vsel %vm592, %v535, %v599
        %v601 = vsel %vm580, %v397, %v373
        %v602 = vsel %vm582, %v421, %v601
        %v603 = vsel %vm584, %v445, %v602
        %v604 = vsel %vm586, %v469, %v603
        %v605 = vsel %vm588, %v493, %v604
        %v606 = vsel %vm590, %v517, %v605
        %v607 = vsel %vm592, %v541, %v606
        %v608 = vsel %vm580, %v403, %v379
        %v609 = vsel %vm582, %v427, %v608
        %v610 = vsel %vm584, %v451, %v609
        %v611 = vsel %vm586, %v475, %v610
        %v612 = vsel %vm588, %v499, %v611
        %v613 = vsel %vm590, %v523, %v612
        %v614 = vsel %vm592, %v547, %v613
        %v619 = vadd.f32 %v320, %v593
        %v620 = vadd.f32 %v321, %v600
        %v621 = vadd.f32 %v322, %v607
        %v622 = vadd.f32 %v323, %v614
        %623 = vst [vmem:[#allocation2] sm:$0xff] %v619
        %624 = vst [vmem:[#allocation2 + $0x8] sm:$0xff] %v620
        %625 = vst [vmem:[#allocation2 + $0x10] sm:$0xff] %v621
        %626 = vst [vmem:[#allocation2 + $0x18] sm:$0xff] %v622
        %p627 = scmp.eq.s32.totalorder %s27, 3
        // Predicated region
        $region61: #{tpu_custom_call.1} parent=39 // pred_check
          %p628 = pneg %p627
        $region62: #{tpu_custom_call.1} parent=39 // pred_check_branch
          %630 = sbr.rel (%p628) target = $region64
        $region63: #{tpu_custom_call.1} parent=39 // pred_region
          %v631 = vld [vmem:[#allocation4] sm:$0xff]
          %v632 = vld [vmem:[#allocation4 + $0x8] sm:$0xff]
          %v633 = vld [vmem:[#allocation4 + $0x10] sm:$0xff]
          %v634 = vld [vmem:[#allocation4 + $0x18] sm:$0xff]
          %v635 = vld [vmem:[#allocation8] sm:$0xff]
          %v636 = vld [vmem:[#allocation8 + $0x8] sm:$0xff]
          %v637 = vld [vmem:[#allocation8 + $0x10] sm:$0xff]
          %v638 = vld [vmem:[#allocation8 + $0x18] sm:$0xff]
          %v639 = vld [vmem:[#allocation8 + $0x20] sm:$0xff]
          %v640 = vld [vmem:[#allocation8 + $0x28] sm:$0xff]
          %v641 = vld [vmem:[#allocation8 + $0x30] sm:$0xff]
          %v642 = vld [vmem:[#allocation8 + $0x38] sm:$0xff]
          %v643 = vld [vmem:[#allocation8 + $0x40] sm:$0xff]
          %v644 = vld [vmem:[#allocation8 + $0x48] sm:$0xff]
          %v645 = vld [vmem:[#allocation8 + $0x50] sm:$0xff]
          %v646 = vld [vmem:[#allocation8 + $0x58] sm:$0xff]
          %v647 = vld [vmem:[#allocation8 + $0x60] sm:$0xff]
          %v648 = vld [vmem:[#allocation8 + $0x68] sm:$0xff]
          %v649 = vld [vmem:[#allocation8 + $0x70] sm:$0xff]
          %v650 = vld [vmem:[#allocation8 + $0x78] sm:$0xff]
          %v651 = vld [vmem:[#allocation8 + $0x80] sm:$0xff]
          %v652 = vld [vmem:[#allocation8 + $0x88] sm:$0xff]
          %v653 = vld [vmem:[#allocation8 + $0x90] sm:$0xff]
          %v654 = vld [vmem:[#allocation8 + $0x98] sm:$0xff]
          %v655 = vld [vmem:[#allocation8 + $0xa0] sm:$0xff]
          %v656 = vld [vmem:[#allocation8 + $0xa8] sm:$0xff]
          %v657 = vld [vmem:[#allocation8 + $0xb0] sm:$0xff]
          %v658 = vld [vmem:[#allocation8 + $0xb8] sm:$0xff]
          %v659 = vld [vmem:[#allocation8 + $0xc0] sm:$0xff]
          %v660 = vld [vmem:[#allocation8 + $0xc8] sm:$0xff]
          %v661 = vld [vmem:[#allocation8 + $0xd0] sm:$0xff]
          %v662 = vld [vmem:[#allocation8 + $0xd8] sm:$0xff]
          %v663 = vld [vmem:[#allocation8 + $0xe0] sm:$0xff]
          %v664 = vld [vmem:[#allocation8 + $0xe8] sm:$0xff]
          %v665 = vld [vmem:[#allocation8 + $0xf0] sm:$0xff]
          %v666 = vld [vmem:[#allocation8 + $0xf8] sm:$0xff]
          %v667 = vld [vmem:[#allocation8 + $0x100] sm:$0xff]
          %v668 = vld [vmem:[#allocation8 + $0x108] sm:$0xff]
          %v669 = vld [vmem:[#allocation8 + $0x110] sm:$0xff]
          %v670 = vld [vmem:[#allocation8 + $0x118] sm:$0xff]
          %v671 = vld [vmem:[#allocation8 + $0x120] sm:$0xff]
          %v672 = vld [vmem:[#allocation8 + $0x128] sm:$0xff]
          %v673 = vld [vmem:[#allocation8 + $0x130] sm:$0xff]
          %v674 = vld [vmem:[#allocation8 + $0x138] sm:$0xff]
          %v675 = vld [vmem:[#allocation8 + $0x140] sm:$0xff]
          %v676 = vld [vmem:[#allocation8 + $0x148] sm:$0xff]
          %v677 = vld [vmem:[#allocation8 + $0x150] sm:$0xff]
          %v678 = vld [vmem:[#allocation8 + $0x158] sm:$0xff]
          %v679 = vld [vmem:[#allocation8 + $0x160] sm:$0xff]
          %v680 = vld [vmem:[#allocation8 + $0x168] sm:$0xff]
          %v681 = vld [vmem:[#allocation8 + $0x170] sm:$0xff]
          %v682 = vld [vmem:[#allocation8 + $0x178] sm:$0xff]
          %v683 = vld [vmem:[#allocation8 + $0x180] sm:$0xff]
          %v684 = vld [vmem:[#allocation8 + $0x188] sm:$0xff]
          %v685 = vld [vmem:[#allocation8 + $0x190] sm:$0xff]
          %v686 = vld [vmem:[#allocation8 + $0x198] sm:$0xff]
          %v687 = vld [vmem:[#allocation8 + $0x1a0] sm:$0xff]
          %v688 = vld [vmem:[#allocation8 + $0x1a8] sm:$0xff]
          %v689 = vld [vmem:[#allocation8 + $0x1b0] sm:$0xff]
          %v690 = vld [vmem:[#allocation8 + $0x1b8] sm:$0xff]
          %v691 = vld [vmem:[#allocation8 + $0x1c0] sm:$0xff]
          %v692 = vld [vmem:[#allocation8 + $0x1c8] sm:$0xff]
          %v693 = vld [vmem:[#allocation8 + $0x1d0] sm:$0xff]
          %v694 = vld [vmem:[#allocation8 + $0x1d8] sm:$0xff]
          %v695 = vld [vmem:[#allocation8 + $0x1e0] sm:$0xff]
          %v696 = vld [vmem:[#allocation8 + $0x1e8] sm:$0xff]
          %v697 = vld [vmem:[#allocation8 + $0x1f0] sm:$0xff]
          %v698 = vld [vmem:[#allocation8 + $0x1f8] sm:$0xff]
          %v699 = vld [vmem:[#allocation8 + $0x200] sm:$0xff]
          %v700 = vld [vmem:[#allocation8 + $0x208] sm:$0xff]
          %v701 = vld [vmem:[#allocation8 + $0x210] sm:$0xff]
          %v702 = vld [vmem:[#allocation8 + $0x218] sm:$0xff]
          %v703 = vld [vmem:[#allocation8 + $0x220] sm:$0xff]
          %v704 = vld [vmem:[#allocation8 + $0x228] sm:$0xff]
          %v705 = vld [vmem:[#allocation8 + $0x230] sm:$0xff]
          %v706 = vld [vmem:[#allocation8 + $0x238] sm:$0xff]
          %v707 = vld [vmem:[#allocation8 + $0x240] sm:$0xff]
          %v708 = vld [vmem:[#allocation8 + $0x248] sm:$0xff]
          %v709 = vld [vmem:[#allocation8 + $0x250] sm:$0xff]
          %v710 = vld [vmem:[#allocation8 + $0x258] sm:$0xff]
          %v711 = vld [vmem:[#allocation8 + $0x260] sm:$0xff]
          %v712 = vld [vmem:[#allocation8 + $0x268] sm:$0xff]
          %v713 = vld [vmem:[#allocation8 + $0x270] sm:$0xff]
          %v714 = vld [vmem:[#allocation8 + $0x278] sm:$0xff]
          %v715 = vld [vmem:[#allocation8 + $0x280] sm:$0xff]
          %v716 = vld [vmem:[#allocation8 + $0x288] sm:$0xff]
          %v717 = vld [vmem:[#allocation8 + $0x290] sm:$0xff]
          %v718 = vld [vmem:[#allocation8 + $0x298] sm:$0xff]
          %v719 = vld [vmem:[#allocation8 + $0x2a0] sm:$0xff]
          %v720 = vld [vmem:[#allocation8 + $0x2a8] sm:$0xff]
          %v721 = vld [vmem:[#allocation8 + $0x2b0] sm:$0xff]
          %v722 = vld [vmem:[#allocation8 + $0x2b8] sm:$0xff]
          %v723 = vld [vmem:[#allocation8 + $0x2c0] sm:$0xff]
          %v724 = vld [vmem:[#allocation8 + $0x2c8] sm:$0xff]
          %v725 = vld [vmem:[#allocation8 + $0x2d0] sm:$0xff]
          %v726 = vld [vmem:[#allocation8 + $0x2d8] sm:$0xff]
          %v727 = vld [vmem:[#allocation8 + $0x2e0] sm:$0xff]
          %v728 = vld [vmem:[#allocation8 + $0x2e8] sm:$0xff]
          %v729 = vld [vmem:[#allocation8 + $0x2f0] sm:$0xff]
          %v730 = vld [vmem:[#allocation8 + $0x2f8] sm:$0xff]
          %v731 = vld [vmem:[#allocation8 + $0x300] sm:$0xff]
          %v732 = vld [vmem:[#allocation8 + $0x308] sm:$0xff]
          %v733 = vld [vmem:[#allocation8 + $0x310] sm:$0xff]
          %v734 = vld [vmem:[#allocation8 + $0x318] sm:$0xff]
          %v735 = vld [vmem:[#allocation8 + $0x320] sm:$0xff]
          %v736 = vld [vmem:[#allocation8 + $0x328] sm:$0xff]
          %v737 = vld [vmem:[#allocation8 + $0x330] sm:$0xff]
          %v738 = vld [vmem:[#allocation8 + $0x338] sm:$0xff]
          %v739 = vld [vmem:[#allocation8 + $0x340] sm:$0xff]
          %v740 = vld [vmem:[#allocation8 + $0x348] sm:$0xff]
          %v741 = vld [vmem:[#allocation8 + $0x350] sm:$0xff]
          %v742 = vld [vmem:[#allocation8 + $0x358] sm:$0xff]
          %v743 = vld [vmem:[#allocation8 + $0x360] sm:$0xff]
          %v744 = vld [vmem:[#allocation8 + $0x368] sm:$0xff]
          %v745 = vld [vmem:[#allocation8 + $0x370] sm:$0xff]
          %v746 = vld [vmem:[#allocation8 + $0x378] sm:$0xff]
          %v747 = vld [vmem:[#allocation8 + $0x380] sm:$0xff]
          %v748 = vld [vmem:[#allocation8 + $0x388] sm:$0xff]
          %v749 = vld [vmem:[#allocation8 + $0x390] sm:$0xff]
          %v750 = vld [vmem:[#allocation8 + $0x398] sm:$0xff]
          %v751 = vld [vmem:[#allocation8 + $0x3a0] sm:$0xff]
          %v752 = vld [vmem:[#allocation8 + $0x3a8] sm:$0xff]
          %v753 = vld [vmem:[#allocation8 + $0x3b0] sm:$0xff]
          %v754 = vld [vmem:[#allocation8 + $0x3b8] sm:$0xff]
          %v755 = vld [vmem:[#allocation8 + $0x3c0] sm:$0xff]
          %v756 = vld [vmem:[#allocation8 + $0x3c8] sm:$0xff]
          %v757 = vld [vmem:[#allocation8 + $0x3d0] sm:$0xff]
          %v758 = vld [vmem:[#allocation8 + $0x3d8] sm:$0xff]
          %v759 = vld [vmem:[#allocation8 + $0x3e0] sm:$0xff]
          %v760 = vld [vmem:[#allocation8 + $0x3e8] sm:$0xff]
          %v761 = vld [vmem:[#allocation8 + $0x3f0] sm:$0xff]
          %v762 = vld [vmem:[#allocation8 + $0x3f8] sm:$0xff]
          %v763 = vld [vmem:[#allocation8 + $0x400] sm:$0xff]
          %v764 = vld [vmem:[#allocation8 + $0x408] sm:$0xff]
          %v765 = vld [vmem:[#allocation8 + $0x410] sm:$0xff]
          %v766 = vld [vmem:[#allocation8 + $0x418] sm:$0xff]
          %v767 = vld [vmem:[#allocation8 + $0x420] sm:$0xff]
          %v768 = vld [vmem:[#allocation8 + $0x428] sm:$0xff]
          %v769 = vld [vmem:[#allocation8 + $0x430] sm:$0xff]
          %v770 = vld [vmem:[#allocation8 + $0x438] sm:$0xff]
          %v771 = vld [vmem:[#allocation8 + $0x440] sm:$0xff]
          %v772 = vld [vmem:[#allocation8 + $0x448] sm:$0xff]
          %v773 = vld [vmem:[#allocation8 + $0x450] sm:$0xff]
          %v774 = vld [vmem:[#allocation8 + $0x458] sm:$0xff]
          %v775 = vld [vmem:[#allocation8 + $0x460] sm:$0xff]
          %v776 = vld [vmem:[#allocation8 + $0x468] sm:$0xff]
          %v777 = vld [vmem:[#allocation8 + $0x470] sm:$0xff]
          %v778 = vld [vmem:[#allocation8 + $0x478] sm:$0xff]
          %v779 = vld [vmem:[#allocation8 + $0x480] sm:$0xff]
          %v780 = vld [vmem:[#allocation8 + $0x488] sm:$0xff]
          %v781 = vld [vmem:[#allocation8 + $0x490] sm:$0xff]
          %v782 = vld [vmem:[#allocation8 + $0x498] sm:$0xff]
          %v783 = vld [vmem:[#allocation8 + $0x4a0] sm:$0xff]
          %v784 = vld [vmem:[#allocation8 + $0x4a8] sm:$0xff]
          %v785 = vld [vmem:[#allocation8 + $0x4b0] sm:$0xff]
          %v786 = vld [vmem:[#allocation8 + $0x4b8] sm:$0xff]
          %v787 = vld [vmem:[#allocation8 + $0x4c0] sm:$0xff]
          %v788 = vld [vmem:[#allocation8 + $0x4c8] sm:$0xff]
          %v789 = vld [vmem:[#allocation8 + $0x4d0] sm:$0xff]
          %v790 = vld [vmem:[#allocation8 + $0x4d8] sm:$0xff]
          %v791 = vld [vmem:[#allocation8 + $0x4e0] sm:$0xff]
          %v792 = vld [vmem:[#allocation8 + $0x4e8] sm:$0xff]
          %v793 = vld [vmem:[#allocation8 + $0x4f0] sm:$0xff]
          %v794 = vld [vmem:[#allocation8 + $0x4f8] sm:$0xff]
          %v795 = vld [vmem:[#allocation8 + $0x500] sm:$0xff]
          %v796 = vld [vmem:[#allocation8 + $0x508] sm:$0xff]
          %v797 = vld [vmem:[#allocation8 + $0x510] sm:$0xff]
          %v798 = vld [vmem:[#allocation8 + $0x518] sm:$0xff]
          %v799 = vld [vmem:[#allocation8 + $0x520] sm:$0xff]
          %v800 = vld [vmem:[#allocation8 + $0x528] sm:$0xff]
          %v801 = vld [vmem:[#allocation8 + $0x530] sm:$0xff]
          %v802 = vld [vmem:[#allocation8 + $0x538] sm:$0xff]
          %v803 = vld [vmem:[#allocation8 + $0x540] sm:$0xff]
          %v804 = vld [vmem:[#allocation8 + $0x548] sm:$0xff]
          %v805 = vld [vmem:[#allocation8 + $0x550] sm:$0xff]
          %v806 = vld [vmem:[#allocation8 + $0x558] sm:$0xff]
          %v807 = vld [vmem:[#allocation8 + $0x560] sm:$0xff]
          %v808 = vld [vmem:[#allocation8 + $0x568] sm:$0xff]
          %v809 = vld [vmem:[#allocation8 + $0x570] sm:$0xff]
          %v810 = vld [vmem:[#allocation8 + $0x578] sm:$0xff]
          %v811 = vld [vmem:[#allocation8 + $0x580] sm:$0xff]
          %v812 = vld [vmem:[#allocation8 + $0x588] sm:$0xff]
          %v813 = vld [vmem:[#allocation8 + $0x590] sm:$0xff]
          %v814 = vld [vmem:[#allocation8 + $0x598] sm:$0xff]
          %v815 = vld [vmem:[#allocation8 + $0x5a0] sm:$0xff]
          %v816 = vld [vmem:[#allocation8 + $0x5a8] sm:$0xff]
          %v817 = vld [vmem:[#allocation8 + $0x5b0] sm:$0xff]
          %v818 = vld [vmem:[#allocation8 + $0x5b8] sm:$0xff]
          %v819 = vld [vmem:[#allocation8 + $0x5c0] sm:$0xff]
          %v820 = vld [vmem:[#allocation8 + $0x5c8] sm:$0xff]
          %v821 = vld [vmem:[#allocation8 + $0x5d0] sm:$0xff]
          %v822 = vld [vmem:[#allocation8 + $0x5d8] sm:$0xff]
          %v823 = vld [vmem:[#allocation8 + $0x5e0] sm:$0xff]
          %v824 = vld [vmem:[#allocation8 + $0x5e8] sm:$0xff]
          %v825 = vld [vmem:[#allocation8 + $0x5f0] sm:$0xff]
          %v826 = vld [vmem:[#allocation8 + $0x5f8] sm:$0xff]
          %v827 = vld [vmem:[#allocation8 + $0x600] sm:$0xff]
          %v828 = vld [vmem:[#allocation8 + $0x608] sm:$0xff]
          %v829 = vld [vmem:[#allocation8 + $0x610] sm:$0xff]
          %v830 = vld [vmem:[#allocation8 + $0x618] sm:$0xff]
          %v831 = vld [vmem:[#allocation8 + $0x620] sm:$0xff]
          %v832 = vld [vmem:[#allocation8 + $0x628] sm:$0xff]
          %v833 = vld [vmem:[#allocation8 + $0x630] sm:$0xff]
          %v834 = vld [vmem:[#allocation8 + $0x638] sm:$0xff]
          %v835 = vld [vmem:[#allocation8 + $0x640] sm:$0xff]
          %v836 = vld [vmem:[#allocation8 + $0x648] sm:$0xff]
          %v837 = vld [vmem:[#allocation8 + $0x650] sm:$0xff]
          %v838 = vld [vmem:[#allocation8 + $0x658] sm:$0xff]
          %v839 = vld [vmem:[#allocation8 + $0x660] sm:$0xff]
          %v840 = vld [vmem:[#allocation8 + $0x668] sm:$0xff]
          %v841 = vld [vmem:[#allocation8 + $0x670] sm:$0xff]
          %v842 = vld [vmem:[#allocation8 + $0x678] sm:$0xff]
          %v843 = vld [vmem:[#allocation8 + $0x680] sm:$0xff]
          %v844 = vld [vmem:[#allocation8 + $0x688] sm:$0xff]
          %v845 = vld [vmem:[#allocation8 + $0x690] sm:$0xff]
          %v846 = vld [vmem:[#allocation8 + $0x698] sm:$0xff]
          %v847 = vld [vmem:[#allocation8 + $0x6a0] sm:$0xff]
          %v848 = vld [vmem:[#allocation8 + $0x6a8] sm:$0xff]
          %v849 = vld [vmem:[#allocation8 + $0x6b0] sm:$0xff]
          %v850 = vld [vmem:[#allocation8 + $0x6b8] sm:$0xff]
          %v851 = vld [vmem:[#allocation8 + $0x6c0] sm:$0xff]
          %v852 = vld [vmem:[#allocation8 + $0x6c8] sm:$0xff]
          %v853 = vld [vmem:[#allocation8 + $0x6d0] sm:$0xff]
          %v854 = vld [vmem:[#allocation8 + $0x6d8] sm:$0xff]
          %v855 = vld [vmem:[#allocation8 + $0x6e0] sm:$0xff]
          %v856 = vld [vmem:[#allocation8 + $0x6e8] sm:$0xff]
          %v857 = vld [vmem:[#allocation8 + $0x6f0] sm:$0xff]
          %v858 = vld [vmem:[#allocation8 + $0x6f8] sm:$0xff]
          %v859 = vld [vmem:[#allocation8 + $0x700] sm:$0xff]
          %v860 = vld [vmem:[#allocation8 + $0x708] sm:$0xff]
          %v861 = vld [vmem:[#allocation8 + $0x710] sm:$0xff]
          %v862 = vld [vmem:[#allocation8 + $0x718] sm:$0xff]
          %v863 = vld [vmem:[#allocation8 + $0x720] sm:$0xff]
          %v864 = vld [vmem:[#allocation8 + $0x728] sm:$0xff]
          %v865 = vld [vmem:[#allocation8 + $0x730] sm:$0xff]
          %v866 = vld [vmem:[#allocation8 + $0x738] sm:$0xff]
          %v867 = vld [vmem:[#allocation8 + $0x740] sm:$0xff]
          %v868 = vld [vmem:[#allocation8 + $0x748] sm:$0xff]
          %v869 = vld [vmem:[#allocation8 + $0x750] sm:$0xff]
          %v870 = vld [vmem:[#allocation8 + $0x758] sm:$0xff]
          %v871 = vld [vmem:[#allocation8 + $0x760] sm:$0xff]
          %v872 = vld [vmem:[#allocation8 + $0x768] sm:$0xff]
          %v873 = vld [vmem:[#allocation8 + $0x770] sm:$0xff]
          %v874 = vld [vmem:[#allocation8 + $0x778] sm:$0xff]
          %v875 = vld [vmem:[#allocation8 + $0x780] sm:$0xff]
          %v876 = vld [vmem:[#allocation8 + $0x788] sm:$0xff]
          %v877 = vld [vmem:[#allocation8 + $0x790] sm:$0xff]
          %v878 = vld [vmem:[#allocation8 + $0x798] sm:$0xff]
          %v879 = vld [vmem:[#allocation8 + $0x7a0] sm:$0xff]
          %v880 = vld [vmem:[#allocation8 + $0x7a8] sm:$0xff]
          %v881 = vld [vmem:[#allocation8 + $0x7b0] sm:$0xff]
          %v882 = vld [vmem:[#allocation8 + $0x7b8] sm:$0xff]
          %v883 = vld [vmem:[#allocation8 + $0x7c0] sm:$0xff]
          %v884 = vld [vmem:[#allocation8 + $0x7c8] sm:$0xff]
          %v885 = vld [vmem:[#allocation8 + $0x7d0] sm:$0xff]
          %v886 = vld [vmem:[#allocation8 + $0x7d8] sm:$0xff]
          %v887 = vld [vmem:[#allocation8 + $0x7e0] sm:$0xff]
          %v888 = vld [vmem:[#allocation8 + $0x7e8] sm:$0xff]
          %v889 = vld [vmem:[#allocation8 + $0x7f0] sm:$0xff]
          %v890 = vld [vmem:[#allocation8 + $0x7f8] sm:$0xff]
          %891 = vmatprep.subr.mxu0 %v636
          %892 = vmatpush1.msra.mxu0 %v635
          %893 = vmatprep.subr.mxu0 %v640
          %894 = vmatpush1.msra.mxu0 %v639
          %895 = vmatprep.subr.mxu0 %v644
          %896 = vmatpush1.msra.mxu0 %v643
          %897 = vmatprep.subr.mxu0 %v648
          %898 = vmatpush1.msra.mxu0 %v647
          %899 = vmatprep.subr.mxu0 %v652
          %900 = vmatpush1.msra.mxu0 %v651
          %901 = vmatprep.subr.mxu0 %v656
          %902 = vmatpush1.msra.mxu0 %v655
          %903 = vmatprep.subr.mxu0 %v660
          %904 = vmatpush1.msra.mxu0 %v659
          %905 = vmatprep.subr.mxu0 %v664
          %906 = vmatpush1.msra.mxu0 %v663
          %907 = vmatprep.subr.mxu0 %v668
          %908 = vmatpush1.msra.mxu0 %v667
          %909 = vmatprep.subr.mxu0 %v672
          %910 = vmatpush1.msra.mxu0 %v671
          %911 = vmatprep.subr.mxu0 %v676
          %912 = vmatpush1.msra.mxu0 %v675
          %913 = vmatprep.subr.mxu0 %v680
          %914 = vmatpush1.msra.mxu0 %v679
          %915 = vmatprep.subr.mxu0 %v684
          %916 = vmatpush1.msra.mxu0 %v683
          %917 = vmatprep.subr.mxu0 %v688
          %918 = vmatpush1.msra.mxu0 %v687
          %919 = vmatprep.subr.mxu0 %v692
          %920 = vmatpush1.msra.mxu0 %v691
          %921 = vmatprep.subr.mxu0 %v696
          %922 = vmatpush1.msra.mxu0 %v695
          %923 = vmatprep.subr.mxu0 %v700
          %924 = vmatpush1.msra.mxu0 %v699
          %925 = vmatprep.subr.mxu0 %v704
          %926 = vmatpush1.msra.mxu0 %v703
          %927 = vmatprep.subr.mxu0 %v708
          %928 = vmatpush1.msra.mxu0 %v707
          %929 = vmatprep.subr.mxu0 %v712
          %930 = vmatpush1.msra.mxu0 %v711
          %931 = vmatprep.subr.mxu0 %v716
          %932 = vmatpush1.msra.mxu0 %v715
          %933 = vmatprep.subr.mxu0 %v720
          %934 = vmatpush1.msra.mxu0 %v719
          %935 = vmatprep.subr.mxu0 %v724
          %936 = vmatpush1.msra.mxu0 %v723
          %937 = vmatprep.subr.mxu0 %v728
          %938 = vmatpush1.msra.mxu0 %v727
          %939 = vmatprep.subr.mxu0 %v732
          %940 = vmatpush1.msra.mxu0 %v731
          %941 = vmatprep.subr.mxu0 %v736
          %942 = vmatpush1.msra.mxu0 %v735
          %943 = vmatprep.subr.mxu0 %v740
          %944 = vmatpush1.msra.mxu0 %v739
          %945 = vmatprep.subr.mxu0 %v744
          %946 = vmatpush1.msra.mxu0 %v743
          %947 = vmatprep.subr.mxu0 %v748
          %948 = vmatpush1.msra.mxu0 %v747
          %949 = vmatprep.subr.mxu0 %v752
          %950 = vmatpush1.msra.mxu0 %v751
          %951 = vmatprep.subr.mxu0 %v756
          %952 = vmatpush1.msra.mxu0 %v755
          %953 = vmatprep.subr.mxu0 %v760
          %954 = vmatpush1.msra.mxu0 %v759
          %955 = vmatprep.mubr.f32.mxu0 %v632
          %956 = vmatmul.mubr.f32.gmra.mrb[0].mxu0 %v631
          %v957 = vpop.f32.mrb[0].mxu0
          %v958 = vadd.f32 0.0, %v957
          %v959 = vpop.f32.mrb[0].mxu0
          %v960 = vadd.f32 0.0, %v959
          %961 = vdwg.mxu0
          %962 = vmatprep.subr.mxu0 %v764
          %963 = vmatpush1.msra.mxu0 %v763
          %964 = vmatprep.subr.mxu0 %v768
          %965 = vmatpush1.msra.mxu0 %v767
          %966 = vmatprep.subr.mxu0 %v772
          %967 = vmatpush1.msra.mxu0 %v771
          %968 = vmatprep.subr.mxu0 %v776
          %969 = vmatpush1.msra.mxu0 %v775
          %970 = vmatprep.subr.mxu0 %v780
          %971 = vmatpush1.msra.mxu0 %v779
          %972 = vmatprep.subr.mxu0 %v784
          %973 = vmatpush1.msra.mxu0 %v783
          %974 = vmatprep.subr.mxu0 %v788
          %975 = vmatpush1.msra.mxu0 %v787
          %976 = vmatprep.subr.mxu0 %v792
          %977 = vmatpush1.msra.mxu0 %v791
          %978 = vmatprep.subr.mxu0 %v796
          %979 = vmatpush1.msra.mxu0 %v795
          %980 = vmatprep.subr.mxu0 %v800
          %981 = vmatpush1.msra.mxu0 %v799
          %982 = vmatprep.subr.mxu0 %v804
          %983 = vmatpush1.msra.mxu0 %v803
          %984 = vmatprep.subr.mxu0 %v808
          %985 = vmatpush1.msra.mxu0 %v807
          %986 = vmatprep.subr.mxu0 %v812
          %987 = vmatpush1.msra.mxu0 %v811
          %988 = vmatprep.subr.mxu0 %v816
          %989 = vmatpush1.msra.mxu0 %v815
          %990 = vmatprep.subr.mxu0 %v820
          %991 = vmatpush1.msra.mxu0 %v819
          %992 = vmatprep.subr.mxu0 %v824
          %993 = vmatpush1.msra.mxu0 %v823
          %994 = vmatprep.subr.mxu0 %v828
          %995 = vmatpush1.msra.mxu0 %v827
          %996 = vmatprep.subr.mxu0 %v832
          %997 = vmatpush1.msra.mxu0 %v831
          %998 = vmatprep.subr.mxu0 %v836
          %999 = vmatpush1.msra.mxu0 %v835
          %1000 = vmatprep.subr.mxu0 %v840
          %1001 = vmatpush1.msra.mxu0 %v839
          %1002 = vmatprep.subr.mxu0 %v844
          %1003 = vmatpush1.msra.mxu0 %v843
          %1004 = vmatprep.subr.mxu0 %v848
          %1005 = vmatpush1.msra.mxu0 %v847
          %1006 = vmatprep.subr.mxu0 %v852
          %1007 = vmatpush1.msra.mxu0 %v851
          %1008 = vmatprep.subr.mxu0 %v856
          %1009 = vmatpush1.msra.mxu0 %v855
          %1010 = vmatprep.subr.mxu0 %v860
          %1011 = vmatpush1.msra.mxu0 %v859
          %1012 = vmatprep.subr.mxu0 %v864
          %1013 = vmatpush1.msra.mxu0 %v863
          %1014 = vmatprep.subr.mxu0 %v868
          %1015 = vmatpush1.msra.mxu0 %v867
          %1016 = vmatprep.subr.mxu0 %v872
          %1017 = vmatpush1.msra.mxu0 %v871
          %1018 = vmatprep.subr.mxu0 %v876
          %1019 = vmatpush1.msra.mxu0 %v875
          %1020 = vmatprep.subr.mxu0 %v880
          %1021 = vmatpush1.msra.mxu0 %v879
          %1022 = vmatprep.subr.mxu0 %v884
          %1023 = vmatpush1.msra.mxu0 %v883
          %1024 = vmatprep.subr.mxu0 %v888
          %1025 = vmatpush1.msra.mxu0 %v887
          %1026 = vmatprep.mubr.f32.mxu0 %v634
          %1027 = vmatmul.mubr.f32.gmra.mrb[0].mxu0 %v633
          %v1028 = vpop.f32.mrb[0].mxu0
          %v1029 = vadd.f32 %v958, %v1028
          %v1030 = vpop.f32.mrb[0].mxu0
          %v1031 = vadd.f32 %v960, %v1030
          %1032 = vdwg.mxu0
          %1033 = vmatprep.subr.mxu0 %v638
          %1034 = vmatpush1.msra.mxu0 %v637
          %1035 = vmatprep.subr.mxu0 %v642
          %1036 = vmatpush1.msra.mxu0 %v641
          %1037 = vmatprep.subr.mxu0 %v646
          %1038 = vmatpush1.msra.mxu0 %v645
          %1039 = vmatprep.subr.mxu0 %v650
          %1040 = vmatpush1.msra.mxu0 %v649
          %1041 = vmatprep.subr.mxu0 %v654
          %1042 = vmatpush1.msra.mxu0 %v653
          %1043 = vmatprep.subr.mxu0 %v658
          %1044 = vmatpush1.msra.mxu0 %v657
          %1045 = vmatprep.subr.mxu0 %v662
          %1046 = vmatpush1.msra.mxu0 %v661
          %1047 = vmatprep.subr.mxu0 %v666
          %1048 = vmatpush1.msra.mxu0 %v665
          %1049 = vmatprep.subr.mxu0 %v670
          %1050 = vmatpush1.msra.mxu0 %v669
          %1051 = vmatprep.subr.mxu0 %v674
          %1052 = vmatpush1.msra.mxu0 %v673
          %1053 = vmatprep.subr.mxu0 %v678
          %1054 = vmatpush1.msra.mxu0 %v677
          %1055 = vmatprep.subr.mxu0 %v682
          %1056 = vmatpush1.msra.mxu0 %v681
          %1057 = vmatprep.subr.mxu0 %v686
          %1058 = vmatpush1.msra.mxu0 %v685
          %1059 = vmatprep.subr.mxu0 %v690
          %1060 = vmatpush1.msra.mxu0 %v689
          %1061 = vmatprep.subr.mxu0 %v694
          %1062 = vmatpush1.msra.mxu0 %v693
          %1063 = vmatprep.subr.mxu0 %v698
          %1064 = vmatpush1.msra.mxu0 %v697
          %1065 = vmatprep.subr.mxu0 %v702
          %1066 = vmatpush1.msra.mxu0 %v701
          %1067 = vmatprep.subr.mxu0 %v706
          %1068 = vmatpush1.msra.mxu0 %v705
          %1069 = vmatprep.subr.mxu0 %v710
          %1070 = vmatpush1.msra.mxu0 %v709
          %1071 = vmatprep.subr.mxu0 %v714
          %1072 = vmatpush1.msra.mxu0 %v713
          %1073 = vmatprep.subr.mxu0 %v718
          %1074 = vmatpush1.msra.mxu0 %v717
          %1075 = vmatprep.subr.mxu0 %v722
          %1076 = vmatpush1.msra.mxu0 %v721
          %1077 = vmatprep.subr.mxu0 %v726
          %1078 = vmatpush1.msra.mxu0 %v725
          %1079 = vmatprep.subr.mxu0 %v730
          %1080 = vmatpush1.msra.mxu0 %v729
          %1081 = vmatprep.subr.mxu0 %v734
          %1082 = vmatpush1.msra.mxu0 %v733
          %1083 = vmatprep.subr.mxu0 %v738
          %1084 = vmatpush1.msra.mxu0 %v737
          %1085 = vmatprep.subr.mxu0 %v742
          %1086 = vmatpush1.msra.mxu0 %v741
          %1087 = vmatprep.subr.mxu0 %v746
          %1088 = vmatpush1.msra.mxu0 %v745
          %1089 = vmatprep.subr.mxu0 %v750
          %1090 = vmatpush1.msra.mxu0 %v749
          %1091 = vmatprep.subr.mxu0 %v754
          %1092 = vmatpush1.msra.mxu0 %v753
          %1093 = vmatprep.subr.mxu0 %v758
          %1094 = vmatpush1.msra.mxu0 %v757
          %1095 = vmatprep.subr.mxu0 %v762
          %1096 = vmatpush1.msra.mxu0 %v761
          %1097 = vmatprep.mubr.f32.mxu0 %v632
          %1098 = vmatmul.mubr.f32.gmra.mrb[0].mxu0 %v631
          %v1099 = vpop.f32.mrb[0].mxu0
          %v1100 = vadd.f32 0.0, %v1099
          %v1101 = vpop.f32.mrb[0].mxu0
          %v1102 = vadd.f32 0.0, %v1101
          %1103 = vdwg.mxu0
          %1104 = vmatprep.subr.mxu0 %v766
          %1105 = vmatpush1.msra.mxu0 %v765
          %1106 = vmatprep.subr.mxu0 %v770
          %1107 = vmatpush1.msra.mxu0 %v769
          %1108 = vmatprep.subr.mxu0 %v774
          %1109 = vmatpush1.msra.mxu0 %v773
          %1110 = vmatprep.subr.mxu0 %v778
          %1111 = vmatpush1.msra.mxu0 %v777
          %1112 = vmatprep.subr.mxu0 %v782
          %1113 = vmatpush1.msra.mxu0 %v781
          %1114 = vmatprep.subr.mxu0 %v786
          %1115 = vmatpush1.msra.mxu0 %v785
          %1116 = vmatprep.subr.mxu0 %v790
          %1117 = vmatpush1.msra.mxu0 %v789
          %1118 = vmatprep.subr.mxu0 %v794
          %1119 = vmatpush1.msra.mxu0 %v793
          %1120 = vmatprep.subr.mxu0 %v798
          %1121 = vmatpush1.msra.mxu0 %v797
          %1122 = vmatprep.subr.mxu0 %v802
          %1123 = vmatpush1.msra.mxu0 %v801
          %1124 = vmatprep.subr.mxu0 %v806
          %1125 = vmatpush1.msra.mxu0 %v805
          %1126 = vmatprep.subr.mxu0 %v810
          %1127 = vmatpush1.msra.mxu0 %v809
          %1128 = vmatprep.subr.mxu0 %v814
          %1129 = vmatpush1.msra.mxu0 %v813
          %1130 = vmatprep.subr.mxu0 %v818
          %1131 = vmatpush1.msra.mxu0 %v817
          %1132 = vmatprep.subr.mxu0 %v822
          %1133 = vmatpush1.msra.mxu0 %v821
          %1134 = vmatprep.subr.mxu0 %v826
          %1135 = vmatpush1.msra.mxu0 %v825
          %1136 = vmatprep.subr.mxu0 %v830
          %1137 = vmatpush1.msra.mxu0 %v829
          %1138 = vmatprep.subr.mxu0 %v834
          %1139 = vmatpush1.msra.mxu0 %v833
          %1140 = vmatprep.subr.mxu0 %v838
          %1141 = vmatpush1.msra.mxu0 %v837
          %1142 = vmatprep.subr.mxu0 %v842
          %1143 = vmatpush1.msra.mxu0 %v841
          %1144 = vmatprep.subr.mxu0 %v846
          %1145 = vmatpush1.msra.mxu0 %v845
          %1146 = vmatprep.subr.mxu0 %v850
          %1147 = vmatpush1.msra.mxu0 %v849
          %1148 = vmatprep.subr.mxu0 %v854
          %1149 = vmatpush1.msra.mxu0 %v853
          %1150 = vmatprep.subr.mxu0 %v858
          %1151 = vmatpush1.msra.mxu0 %v857
          %1152 = vmatprep.subr.mxu0 %v862
          %1153 = vmatpush1.msra.mxu0 %v861
          %1154 = vmatprep.subr.mxu0 %v866
          %1155 = vmatpush1.msra.mxu0 %v865
          %1156 = vmatprep.subr.mxu0 %v870
          %1157 = vmatpush1.msra.mxu0 %v869
          %1158 = vmatprep.subr.mxu0 %v874
          %1159 = vmatpush1.msra.mxu0 %v873
          %1160 = vmatprep.subr.mxu0 %v878
          %1161 = vmatpush1.msra.mxu0 %v877
          %1162 = vmatprep.subr.mxu0 %v882
          %1163 = vmatpush1.msra.mxu0 %v881
          %1164 = vmatprep.subr.mxu0 %v886
          %1165 = vmatpush1.msra.mxu0 %v885
          %1166 = vmatprep.subr.mxu0 %v890
          %1167 = vmatpush1.msra.mxu0 %v889
          %1168 = vmatprep.mubr.f32.mxu0 %v634
          %1169 = vmatmul.mubr.f32.gmra.mrb[0].mxu0 %v633
          %v1170 = vpop.f32.mrb[0].mxu0
          %v1171 = vadd.f32 %v1100, %v1170
          %v1172 = vpop.f32.mrb[0].mxu0
          %v1173 = vadd.f32 %v1102, %v1172
          %1174 = vdwg.mxu0
          %v1175 = vld [vmem:[#allocation2] sm:$0xff]
          %v1176 = vld [vmem:[#allocation2 + $0x8] sm:$0xff]
          %v1177 = vld [vmem:[#allocation2 + $0x10] sm:$0xff]
          %v1178 = vld [vmem:[#allocation2 + $0x18] sm:$0xff]
          %v1179 = vmul.f32 %v1175, 0.03125
          %v1180 = vmul.f32 %v1176, 0.03125
          %v1181 = vmul.f32 %v1177, 0.03125
          %v1182 = vmul.f32 %v1178, 0.03125
          %v1183 = vld [vmem:[#allocation9] sm:$0xff]
          %v1184 = vld [vmem:[#allocation9 + $0x8] sm:$0xff]
          %v1185 = vld [vmem:[#allocation9 + $0x10] sm:$0xff]
          %v1186 = vld [vmem:[#allocation9 + $0x18] sm:$0xff]
          %v1187 = vld [vmem:[#allocation9 + $0x20] sm:$0xff]
          %v1188 = vld [vmem:[#allocation9 + $0x28] sm:$0xff]
          %v1189 = vld [vmem:[#allocation9 + $0x30] sm:$0xff]
          %v1190 = vld [vmem:[#allocation9 + $0x38] sm:$0xff]
          %v1191 = vld [vmem:[#allocation9 + $0x40] sm:$0xff]
          %v1192 = vld [vmem:[#allocation9 + $0x48] sm:$0xff]
          %v1193 = vld [vmem:[#allocation9 + $0x50] sm:$0xff]
          %v1194 = vld [vmem:[#allocation9 + $0x58] sm:$0xff]
          %v1195 = vld [vmem:[#allocation9 + $0x60] sm:$0xff]
          %v1196 = vld [vmem:[#allocation9 + $0x68] sm:$0xff]
          %v1197 = vld [vmem:[#allocation9 + $0x70] sm:$0xff]
          %v1198 = vld [vmem:[#allocation9 + $0x78] sm:$0xff]
          %v1199 = vld [vmem:[#allocation9 + $0x80] sm:$0xff]
          %v1200 = vld [vmem:[#allocation9 + $0x88] sm:$0xff]
          %v1201 = vld [vmem:[#allocation9 + $0x90] sm:$0xff]
          %v1202 = vld [vmem:[#allocation9 + $0x98] sm:$0xff]
          %v1203 = vld [vmem:[#allocation9 + $0xa0] sm:$0xff]
          %v1204 = vld [vmem:[#allocation9 + $0xa8] sm:$0xff]
          %v1205 = vld [vmem:[#allocation9 + $0xb0] sm:$0xff]
          %v1206 = vld [vmem:[#allocation9 + $0xb8] sm:$0xff]
          %v1207 = vld [vmem:[#allocation9 + $0xc0] sm:$0xff]
          %v1208 = vld [vmem:[#allocation9 + $0xc8] sm:$0xff]
          %v1209 = vld [vmem:[#allocation9 + $0xd0] sm:$0xff]
          %v1210 = vld [vmem:[#allocation9 + $0xd8] sm:$0xff]
          %v1211 = vld [vmem:[#allocation9 + $0xe0] sm:$0xff]
          %v1212 = vld [vmem:[#allocation9 + $0xe8] sm:$0xff]
          %v1213 = vld [vmem:[#allocation9 + $0xf0] sm:$0xff]
          %v1214 = vld [vmem:[#allocation9 + $0xf8] sm:$0xff]
          %v1215 = vld [vmem:[#allocation9 + $0x100] sm:$0xff]
          %v1216 = vld [vmem:[#allocation9 + $0x108] sm:$0xff]
          %v1217 = vld [vmem:[#allocation9 + $0x110] sm:$0xff]
          %v1218 = vld [vmem:[#allocation9 + $0x118] sm:$0xff]
          %v1219 = vld [vmem:[#allocation9 + $0x120] sm:$0xff]
          %v1220 = vld [vmem:[#allocation9 + $0x128] sm:$0xff]
          %v1221 = vld [vmem:[#allocation9 + $0x130] sm:$0xff]
          %v1222 = vld [vmem:[#allocation9 + $0x138] sm:$0xff]
          %v1223 = vld [vmem:[#allocation9 + $0x140] sm:$0xff]
          %v1224 = vld [vmem:[#allocation9 + $0x148] sm:$0xff]
          %v1225 = vld [vmem:[#allocation9 + $0x150] sm:$0xff]
          %v1226 = vld [vmem:[#allocation9 + $0x158] sm:$0xff]
          %v1227 = vld [vmem:[#allocation9 + $0x160] sm:$0xff]
          %v1228 = vld [vmem:[#allocation9 + $0x168] sm:$0xff]
          %v1229 = vld [vmem:[#allocation9 + $0x170] sm:$0xff]
          %v1230 = vld [vmem:[#allocation9 + $0x178] sm:$0xff]
          %v1231 = vld [vmem:[#allocation9 + $0x180] sm:$0xff]
          %v1232 = vld [vmem:[#allocation9 + $0x188] sm:$0xff]
          %v1233 = vld [vmem:[#allocation9 + $0x190] sm:$0xff]
          %v1234 = vld [vmem:[#allocation9 + $0x198] sm:$0xff]
          %v1235 = vld [vmem:[#allocation9 + $0x1a0] sm:$0xff]
          %v1236 = vld [vmem:[#allocation9 + $0x1a8] sm:$0xff]
          %v1237 = vld [vmem:[#allocation9 + $0x1b0] sm:$0xff]
          %v1238 = vld [vmem:[#allocation9 + $0x1b8] sm:$0xff]
          %v1239 = vld [vmem:[#allocation9 + $0x1c0] sm:$0xff]
          %v1240 = vld [vmem:[#allocation9 + $0x1c8] sm:$0xff]
          %v1241 = vld [vmem:[#allocation9 + $0x1d0] sm:$0xff]
          %v1242 = vld [vmem:[#allocation9 + $0x1d8] sm:$0xff]
          %v1243 = vld [vmem:[#allocation9 + $0x1e0] sm:$0xff]
          %v1244 = vld [vmem:[#allocation9 + $0x1e8] sm:$0xff]
          %v1245 = vld [vmem:[#allocation9 + $0x1f0] sm:$0xff]
          %v1246 = vld [vmem:[#allocation9 + $0x1f8] sm:$0xff]
          %v1247 = vld [vmem:[#allocation9 + $0x200] sm:$0xff]
          %v1248 = vld [vmem:[#allocation9 + $0x208] sm:$0xff]
          %v1249 = vld [vmem:[#allocation9 + $0x210] sm:$0xff]
          %v1250 = vld [vmem:[#allocation9 + $0x218] sm:$0xff]
          %v1251 = vld [vmem:[#allocation9 + $0x220] sm:$0xff]
          %v1252 = vld [vmem:[#allocation9 + $0x228] sm:$0xff]
          %v1253 = vld [vmem:[#allocation9 + $0x230] sm:$0xff]
          %v1254 = vld [vmem:[#allocation9 + $0x238] sm:$0xff]
          %v1255 = vld [vmem:[#allocation9 + $0x240] sm:$0xff]
          %v1256 = vld [vmem:[#allocation9 + $0x248] sm:$0xff]
          %v1257 = vld [vmem:[#allocation9 + $0x250] sm:$0xff]
          %v1258 = vld [vmem:[#allocation9 + $0x258] sm:$0xff]
          %v1259 = vld [vmem:[#allocation9 + $0x260] sm:$0xff]
          %v1260 = vld [vmem:[#allocation9 + $0x268] sm:$0xff]
          %v1261 = vld [vmem:[#allocation9 + $0x270] sm:$0xff]
          %v1262 = vld [vmem:[#allocation9 + $0x278] sm:$0xff]
          %v1263 = vld [vmem:[#allocation9 + $0x280] sm:$0xff]
          %v1264 = vld [vmem:[#allocation9 + $0x288] sm:$0xff]
          %v1265 = vld [vmem:[#allocation9 + $0x290] sm:$0xff]
          %v1266 = vld [vmem:[#allocation9 + $0x298] sm:$0xff]
          %v1267 = vld [vmem:[#allocation9 + $0x2a0] sm:$0xff]
          %v1268 = vld [vmem:[#allocation9 + $0x2a8] sm:$0xff]
          %v1269 = vld [vmem:[#allocation9 + $0x2b0] sm:$0xff]
          %v1270 = vld [vmem:[#allocation9 + $0x2b8] sm:$0xff]
          %v1271 = vld [vmem:[#allocation9 + $0x2c0] sm:$0xff]
          %v1272 = vld [vmem:[#allocation9 + $0x2c8] sm:$0xff]
          %v1273 = vld [vmem:[#allocation9 + $0x2d0] sm:$0xff]
          %v1274 = vld [vmem:[#allocation9 + $0x2d8] sm:$0xff]
          %v1275 = vld [vmem:[#allocation9 + $0x2e0] sm:$0xff]
          %v1276 = vld [vmem:[#allocation9 + $0x2e8] sm:$0xff]
          %v1277 = vld [vmem:[#allocation9 + $0x2f0] sm:$0xff]
          %v1278 = vld [vmem:[#allocation9 + $0x2f8] sm:$0xff]
          %v1279 = vld [vmem:[#allocation9 + $0x300] sm:$0xff]
          %v1280 = vld [vmem:[#allocation9 + $0x308] sm:$0xff]
          %v1281 = vld [vmem:[#allocation9 + $0x310] sm:$0xff]
          %v1282 = vld [vmem:[#allocation9 + $0x318] sm:$0xff]
          %v1283 = vld [vmem:[#allocation9 + $0x320] sm:$0xff]
          %v1284 = vld [vmem:[#allocation9 + $0x328] sm:$0xff]
          %v1285 = vld [vmem:[#allocation9 + $0x330] sm:$0xff]
          %v1286 = vld [vmem:[#allocation9 + $0x338] sm:$0xff]
          %v1287 = vld [vmem:[#allocation9 + $0x340] sm:$0xff]
          %v1288 = vld [vmem:[#allocation9 + $0x348] sm:$0xff]
          %v1289 = vld [vmem:[#allocation9 + $0x350] sm:$0xff]
          %v1290 = vld [vmem:[#allocation9 + $0x358] sm:$0xff]
          %v1291 = vld [vmem:[#allocation9 + $0x360] sm:$0xff]
          %v1292 = vld [vmem:[#allocation9 + $0x368] sm:$0xff]
          %v1293 = vld [vmem:[#allocation9 + $0x370] sm:$0xff]
          %v1294 = vld [vmem:[#allocation9 + $0x378] sm:$0xff]
          %v1295 = vld [vmem:[#allocation9 + $0x380] sm:$0xff]
          %v1296 = vld [vmem:[#allocation9 + $0x388] sm:$0xff]
          %v1297 = vld [vmem:[#allocation9 + $0x390] sm:$0xff]
          %v1298 = vld [vmem:[#allocation9 + $0x398] sm:$0xff]
          %v1299 = vld [vmem:[#allocation9 + $0x3a0] sm:$0xff]
          %v1300 = vld [vmem:[#allocation9 + $0x3a8] sm:$0xff]
          %v1301 = vld [vmem:[#allocation9 + $0x3b0] sm:$0xff]
          %v1302 = vld [vmem:[#allocation9 + $0x3b8] sm:$0xff]
          %v1303 = vld [vmem:[#allocation9 + $0x3c0] sm:$0xff]
          %v1304 = vld [vmem:[#allocation9 + $0x3c8] sm:$0xff]
          %v1305 = vld [vmem:[#allocation9 + $0x3d0] sm:$0xff]
          %v1306 = vld [vmem:[#allocation9 + $0x3d8] sm:$0xff]
          %v1307 = vld [vmem:[#allocation9 + $0x3e0] sm:$0xff]
          %v1308 = vld [vmem:[#allocation9 + $0x3e8] sm:$0xff]
          %v1309 = vld [vmem:[#allocation9 + $0x3f0] sm:$0xff]
          %v1310 = vld [vmem:[#allocation9 + $0x3f8] sm:$0xff]
          %v1311 = vld [vmem:[#allocation9 + $0x400] sm:$0xff]
          %v1312 = vld [vmem:[#allocation9 + $0x408] sm:$0xff]
          %v1313 = vld [vmem:[#allocation9 + $0x410] sm:$0xff]
          %v1314 = vld [vmem:[#allocation9 + $0x418] sm:$0xff]
          %v1315 = vld [vmem:[#allocation9 + $0x420] sm:$0xff]
          %v1316 = vld [vmem:[#allocation9 + $0x428] sm:$0xff]
          %v1317 = vld [vmem:[#allocation9 + $0x430] sm:$0xff]
          %v1318 = vld [vmem:[#allocation9 + $0x438] sm:$0xff]
          %v1319 = vld [vmem:[#allocation9 + $0x440] sm:$0xff]
          %v1320 = vld [vmem:[#allocation9 + $0x448] sm:$0xff]
          %v1321 = vld [vmem:[#allocation9 + $0x450] sm:$0xff]
          %v1322 = vld [vmem:[#allocation9 + $0x458] sm:$0xff]
          %v1323 = vld [vmem:[#allocation9 + $0x460] sm:$0xff]
          %v1324 = vld [vmem:[#allocation9 + $0x468] sm:$0xff]
          %v1325 = vld [vmem:[#allocation9 + $0x470] sm:$0xff]
          %v1326 = vld [vmem:[#allocation9 + $0x478] sm:$0xff]
          %v1327 = vld [vmem:[#allocation9 + $0x480] sm:$0xff]
          %v1328 = vld [vmem:[#allocation9 + $0x488] sm:$0xff]
          %v1329 = vld [vmem:[#allocation9 + $0x490] sm:$0xff]
          %v1330 = vld [vmem:[#allocation9 + $0x498] sm:$0xff]
          %v1331 = vld [vmem:[#allocation9 + $0x4a0] sm:$0xff]
          %v1332 = vld [vmem:[#allocation9 + $0x4a8] sm:$0xff]
          %v1333 = vld [vmem:[#allocation9 + $0x4b0] sm:$0xff]
          %v1334 = vld [vmem:[#allocation9 + $0x4b8] sm:$0xff]
          %v1335 = vld [vmem:[#allocation9 + $0x4c0] sm:$0xff]
          %v1336 = vld [vmem:[#allocation9 + $0x4c8] sm:$0xff]
          %v1337 = vld [vmem:[#allocation9 + $0x4d0] sm:$0xff]
          %v1338 = vld [vmem:[#allocation9 + $0x4d8] sm:$0xff]
          %v1339 = vld [vmem:[#allocation9 + $0x4e0] sm:$0xff]
          %v1340 = vld [vmem:[#allocation9 + $0x4e8] sm:$0xff]
          %v1341 = vld [vmem:[#allocation9 + $0x4f0] sm:$0xff]
          %v1342 = vld [vmem:[#allocation9 + $0x4f8] sm:$0xff]
          %v1343 = vld [vmem:[#allocation9 + $0x500] sm:$0xff]
          %v1344 = vld [vmem:[#allocation9 + $0x508] sm:$0xff]
          %v1345 = vld [vmem:[#allocation9 + $0x510] sm:$0xff]
          %v1346 = vld [vmem:[#allocation9 + $0x518] sm:$0xff]
          %v1347 = vld [vmem:[#allocation9 + $0x520] sm:$0xff]
          %v1348 = vld [vmem:[#allocation9 + $0x528] sm:$0xff]
          %v1349 = vld [vmem:[#allocation9 + $0x530] sm:$0xff]
          %v1350 = vld [vmem:[#allocation9 + $0x538] sm:$0xff]
          %v1351 = vld [vmem:[#allocation9 + $0x540] sm:$0xff]
          %v1352 = vld [vmem:[#allocation9 + $0x548] sm:$0xff]
          %v1353 = vld [vmem:[#allocation9 + $0x550] sm:$0xff]
          %v1354 = vld [vmem:[#allocation9 + $0x558] sm:$0xff]
          %v1355 = vld [vmem:[#allocation9 + $0x560] sm:$0xff]
          %v1356 = vld [vmem:[#allocation9 + $0x568] sm:$0xff]
          %v1357 = vld [vmem:[#allocation9 + $0x570] sm:$0xff]
          %v1358 = vld [vmem:[#allocation9 + $0x578] sm:$0xff]
          %v1359 = vld [vmem:[#allocation9 + $0x580] sm:$0xff]
          %v1360 = vld [vmem:[#allocation9 + $0x588] sm:$0xff]
          %v1361 = vld [vmem:[#allocation9 + $0x590] sm:$0xff]
          %v1362 = vld [vmem:[#allocation9 + $0x598] sm:$0xff]
          %v1363 = vld [vmem:[#allocation9 + $0x5a0] sm:$0xff]
          %v1364 = vld [vmem:[#allocation9 + $0x5a8] sm:$0xff]
          %v1365 = vld [vmem:[#allocation9 + $0x5b0] sm:$0xff]
          %v1366 = vld [vmem:[#allocation9 + $0x5b8] sm:$0xff]
          %v1367 = vld [vmem:[#allocation9 + $0x5c0] sm:$0xff]
          %v1368 = vld [vmem:[#allocation9 + $0x5c8] sm:$0xff]
          %v1369 = vld [vmem:[#allocation9 + $0x5d0] sm:$0xff]
          %v1370 = vld [vmem:[#allocation9 + $0x5d8] sm:$0xff]
          %v1371 = vld [vmem:[#allocation9 + $0x5e0] sm:$0xff]
          %v1372 = vld [vmem:[#allocation9 + $0x5e8] sm:$0xff]
          %v1373 = vld [vmem:[#allocation9 + $0x5f0] sm:$0xff]
          %v1374 = vld [vmem:[#allocation9 + $0x5f8] sm:$0xff]
          %v1375 = vld [vmem:[#allocation9 + $0x600] sm:$0xff]
          %v1376 = vld [vmem:[#allocation9 + $0x608] sm:$0xff]
          %v1377 = vld [vmem:[#allocation9 + $0x610] sm:$0xff]
          %v1378 = vld [vmem:[#allocation9 + $0x618] sm:$0xff]
          %v1379 = vld [vmem:[#allocation9 + $0x620] sm:$0xff]
          %v1380 = vld [vmem:[#allocation9 + $0x628] sm:$0xff]
          %v1381 = vld [vmem:[#allocation9 + $0x630] sm:$0xff]
          %v1382 = vld [vmem:[#allocation9 + $0x638] sm:$0xff]
          %v1383 = vld [vmem:[#allocation9 + $0x640] sm:$0xff]
          %v1384 = vld [vmem:[#allocation9 + $0x648] sm:$0xff]
          %v1385 = vld [vmem:[#allocation9 + $0x650] sm:$0xff]
          %v1386 = vld [vmem:[#allocation9 + $0x658] sm:$0xff]
          %v1387 = vld [vmem:[#allocation9 + $0x660] sm:$0xff]
          %v1388 = vld [vmem:[#allocation9 + $0x668] sm:$0xff]
          %v1389 = vld [vmem:[#allocation9 + $0x670] sm:$0xff]
          %v1390 = vld [vmem:[#allocation9 + $0x678] sm:$0xff]
          %v1391 = vld [vmem:[#allocation9 + $0x680] sm:$0xff]
          %v1392 = vld [vmem:[#allocation9 + $0x688] sm:$0xff]
          %v1393 = vld [vmem:[#allocation9 + $0x690] sm:$0xff]
          %v1394 = vld [vmem:[#allocation9 + $0x698] sm:$0xff]
          %v1395 = vld [vmem:[#allocation9 + $0x6a0] sm:$0xff]
          %v1396 = vld [vmem:[#allocation9 + $0x6a8] sm:$0xff]
          %v1397 = vld [vmem:[#allocation9 + $0x6b0] sm:$0xff]
          %v1398 = vld [vmem:[#allocation9 + $0x6b8] sm:$0xff]
          %v1399 = vld [vmem:[#allocation9 + $0x6c0] sm:$0xff]
          %v1400 = vld [vmem:[#allocation9 + $0x6c8] sm:$0xff]
          %v1401 = vld [vmem:[#allocation9 + $0x6d0] sm:$0xff]
          %v1402 = vld [vmem:[#allocation9 + $0x6d8] sm:$0xff]
          %v1403 = vld [vmem:[#allocation9 + $0x6e0] sm:$0xff]
          %v1404 = vld [vmem:[#allocation9 + $0x6e8] sm:$0xff]
          %v1405 = vld [vmem:[#allocation9 + $0x6f0] sm:$0xff]
          %v1406 = vld [vmem:[#allocation9 + $0x6f8] sm:$0xff]
          %v1407 = vld [vmem:[#allocation9 + $0x700] sm:$0xff]
          %v1408 = vld [vmem:[#allocation9 + $0x708] sm:$0xff]
          %v1409 = vld [vmem:[#allocation9 + $0x710] sm:$0xff]
          %v1410 = vld [vmem:[#allocation9 + $0x718] sm:$0xff]
          %v1411 = vld [vmem:[#allocation9 + $0x720] sm:$0xff]
          %v1412 = vld [vmem:[#allocation9 + $0x728] sm:$0xff]
          %v1413 = vld [vmem:[#allocation9 + $0x730] sm:$0xff]
          %v1414 = vld [vmem:[#allocation9 + $0x738] sm:$0xff]
          %v1415 = vld [vmem:[#allocation9 + $0x740] sm:$0xff]
          %v1416 = vld [vmem:[#allocation9 + $0x748] sm:$0xff]
          %v1417 = vld [vmem:[#allocation9 + $0x750] sm:$0xff]
          %v1418 = vld [vmem:[#allocation9 + $0x758] sm:$0xff]
          %v1419 = vld [vmem:[#allocation9 + $0x760] sm:$0xff]
          %v1420 = vld [vmem:[#allocation9 + $0x768] sm:$0xff]
          %v1421 = vld [vmem:[#allocation9 + $0x770] sm:$0xff]
          %v1422 = vld [vmem:[#allocation9 + $0x778] sm:$0xff]
          %v1423 = vld [vmem:[#allocation9 + $0x780] sm:$0xff]
          %v1424 = vld [vmem:[#allocation9 + $0x788] sm:$0xff]
          %v1425 = vld [vmem:[#allocation9 + $0x790] sm:$0xff]
          %v1426 = vld [vmem:[#allocation9 + $0x798] sm:$0xff]
          %v1427 = vld [vmem:[#allocation9 + $0x7a0] sm:$0xff]
          %v1428 = vld [vmem:[#allocation9 + $0x7a8] sm:$0xff]
          %v1429 = vld [vmem:[#allocation9 + $0x7b0] sm:$0xff]
          %v1430 = vld [vmem:[#allocation9 + $0x7b8] sm:$0xff]
          %v1431 = vld [vmem:[#allocation9 + $0x7c0] sm:$0xff]
          %v1432 = vld [vmem:[#allocation9 + $0x7c8] sm:$0xff]
          %v1433 = vld [vmem:[#allocation9 + $0x7d0] sm:$0xff]
          %v1434 = vld [vmem:[#allocation9 + $0x7d8] sm:$0xff]
          %v1435 = vld [vmem:[#allocation9 + $0x7e0] sm:$0xff]
          %v1436 = vld [vmem:[#allocation9 + $0x7e8] sm:$0xff]
          %v1437 = vld [vmem:[#allocation9 + $0x7f0] sm:$0xff]
          %v1438 = vld [vmem:[#allocation9 + $0x7f8] sm:$0xff]
          %1439 = vmatprep.subr.mxu0 %v1184
          %1440 = vmatpush1.msra.mxu0 %v1183
          %1441 = vmatprep.subr.mxu0 %v1188
          %1442 = vmatpush1.msra.mxu0 %v1187
          %1443 = vmatprep.subr.mxu0 %v1192
          %1444 = vmatpush1.msra.mxu0 %v1191
          %1445 = vmatprep.subr.mxu0 %v1196
          %1446 = vmatpush1.msra.mxu0 %v1195
          %1447 = vmatprep.subr.mxu0 %v1200
          %1448 = vmatpush1.msra.mxu0 %v1199
          %1449 = vmatprep.subr.mxu0 %v1204
          %1450 = vmatpush1.msra.mxu0 %v1203
          %1451 = vmatprep.subr.mxu0 %v1208
          %1452 = vmatpush1.msra.mxu0 %v1207
          %1453 = vmatprep.subr.mxu0 %v1212
          %1454 = vmatpush1.msra.mxu0 %v1211
          %1455 = vmatprep.subr.mxu0 %v1216
          %1456 = vmatpush1.msra.mxu0 %v1215
          %1457 = vmatprep.subr.mxu0 %v1220
          %1458 = vmatpush1.msra.mxu0 %v1219
          %1459 = vmatprep.subr.mxu0 %v1224
          %1460 = vmatpush1.msra.mxu0 %v1223
          %1461 = vmatprep.subr.mxu0 %v1228
          %1462 = vmatpush1.msra.mxu0 %v1227
          %1463 = vmatprep.subr.mxu0 %v1232
          %1464 = vmatpush1.msra.mxu0 %v1231
          %1465 = vmatprep.subr.mxu0 %v1236
          %1466 = vmatpush1.msra.mxu0 %v1235
          %1467 = vmatprep.subr.mxu0 %v1240
          %1468 = vmatpush1.msra.mxu0 %v1239
          %1469 = vmatprep.subr.mxu0 %v1244
          %1470 = vmatpush1.msra.mxu0 %v1243
          %1471 = vmatprep.subr.mxu0 %v1248
          %1472 = vmatpush1.msra.mxu0 %v1247
          %1473 = vmatprep.subr.mxu0 %v1252
          %1474 = vmatpush1.msra.mxu0 %v1251
          %1475 = vmatprep.subr.mxu0 %v1256
          %1476 = vmatpush1.msra.mxu0 %v1255
          %1477 = vmatprep.subr.mxu0 %v1260
          %1478 = vmatpush1.msra.mxu0 %v1259
          %1479 = vmatprep.subr.mxu0 %v1264
          %1480 = vmatpush1.msra.mxu0 %v1263
          %1481 = vmatprep.subr.mxu0 %v1268
          %1482 = vmatpush1.msra.mxu0 %v1267
          %1483 = vmatprep.subr.mxu0 %v1272
          %1484 = vmatpush1.msra.mxu0 %v1271
          %1485 = vmatprep.subr.mxu0 %v1276
          %1486 = vmatpush1.msra.mxu0 %v1275
          %1487 = vmatprep.subr.mxu0 %v1280
          %1488 = vmatpush1.msra.mxu0 %v1279
          %1489 = vmatprep.subr.mxu0 %v1284
          %1490 = vmatpush1.msra.mxu0 %v1283
          %1491 = vmatprep.subr.mxu0 %v1288
          %1492 = vmatpush1.msra.mxu0 %v1287
          %1493 = vmatprep.subr.mxu0 %v1292
          %1494 = vmatpush1.msra.mxu0 %v1291
          %1495 = vmatprep.subr.mxu0 %v1296
          %1496 = vmatpush1.msra.mxu0 %v1295
          %1497 = vmatprep.subr.mxu0 %v1300
          %1498 = vmatpush1.msra.mxu0 %v1299
          %1499 = vmatprep.subr.mxu0 %v1304
          %1500 = vmatpush1.msra.mxu0 %v1303
          %1501 = vmatprep.subr.mxu0 %v1308
          %1502 = vmatpush1.msra.mxu0 %v1307
          %1503 = vmatprep.mubr.f32.mxu0 %v1180
          %1504 = vmatmul.mubr.f32.gmra.mrb[0].mxu0 %v1179
          %v1505 = vpop.f32.mrb[0].mxu0
          %v1506 = vadd.f32 0.0, %v1505
          %v1507 = vpop.f32.mrb[0].mxu0
          %v1508 = vadd.f32 0.0, %v1507
          %1509 = vdwg.mxu0
          %1510 = vmatprep.subr.mxu0 %v1312
          %1511 = vmatpush1.msra.mxu0 %v1311
          %1512 = vmatprep.subr.mxu0 %v1316
          %1513 = vmatpush1.msra.mxu0 %v1315
          %1514 = vmatprep.subr.mxu0 %v1320
          %1515 = vmatpush1.msra.mxu0 %v1319
          %1516 = vmatprep.subr.mxu0 %v1324
          %1517 = vmatpush1.msra.mxu0 %v1323
          %1518 = vmatprep.subr.mxu0 %v1328
          %1519 = vmatpush1.msra.mxu0 %v1327
          %1520 = vmatprep.subr.mxu0 %v1332
          %1521 = vmatpush1.msra.mxu0 %v1331
          %1522 = vmatprep.subr.mxu0 %v1336
          %1523 = vmatpush1.msra.mxu0 %v1335
          %1524 = vmatprep.subr.mxu0 %v1340
          %1525 = vmatpush1.msra.mxu0 %v1339
          %1526 = vmatprep.subr.mxu0 %v1344
          %1527 = vmatpush1.msra.mxu0 %v1343
          %1528 = vmatprep.subr.mxu0 %v1348
          %1529 = vmatpush1.msra.mxu0 %v1347
          %1530 = vmatprep.subr.mxu0 %v1352
          %1531 = vmatpush1.msra.mxu0 %v1351
          %1532 = vmatprep.subr.mxu0 %v1356
          %1533 = vmatpush1.msra.mxu0 %v1355
          %1534 = vmatprep.subr.mxu0 %v1360
          %1535 = vmatpush1.msra.mxu0 %v1359
          %1536 = vmatprep.subr.mxu0 %v1364
          %1537 = vmatpush1.msra.mxu0 %v1363
          %1538 = vmatprep.subr.mxu0 %v1368
          %1539 = vmatpush1.msra.mxu0 %v1367
          %1540 = vmatprep.subr.mxu0 %v1372
          %1541 = vmatpush1.msra.mxu0 %v1371
          %1542 = vmatprep.subr.mxu0 %v1376
          %1543 = vmatpush1.msra.mxu0 %v1375
          %1544 = vmatprep.subr.mxu0 %v1380
          %1545 = vmatpush1.msra.mxu0 %v1379
          %1546 = vmatprep.subr.mxu0 %v1384
          %1547 = vmatpush1.msra.mxu0 %v1383
          %1548 = vmatprep.subr.mxu0 %v1388
          %1549 = vmatpush1.msra.mxu0 %v1387
          %1550 = vmatprep.subr.mxu0 %v1392
          %1551 = vmatpush1.msra.mxu0 %v1391
          %1552 = vmatprep.subr.mxu0 %v1396
          %1553 = vmatpush1.msra.mxu0 %v1395
          %1554 = vmatprep.subr.mxu0 %v1400
          %1555 = vmatpush1.msra.mxu0 %v1399
          %1556 = vmatprep.subr.mxu0 %v1404
          %1557 = vmatpush1.msra.mxu0 %v1403
          %1558 = vmatprep.subr.mxu0 %v1408
          %1559 = vmatpush1.msra.mxu0 %v1407
          %1560 = vmatprep.subr.mxu0 %v1412
          %1561 = vmatpush1.msra.mxu0 %v1411
          %1562 = vmatprep.subr.mxu0 %v1416
          %1563 = vmatpush1.msra.mxu0 %v1415
          %1564 = vmatprep.subr.mxu0 %v1420
          %1565 = vmatpush1.msra.mxu0 %v1419
          %1566 = vmatprep.subr.mxu0 %v1424
          %1567 = vmatpush1.msra.mxu0 %v1423
          %1568 = vmatprep.subr.mxu0 %v1428
          %1569 = vmatpush1.msra.mxu0 %v1427
          %1570 = vmatprep.subr.mxu0 %v1432
          %1571 = vmatpush1.msra.mxu0 %v1431
          %1572 = vmatprep.subr.mxu0 %v1436
          %1573 = vmatpush1.msra.mxu0 %v1435
          %1574 = vmatprep.mubr.f32.mxu0 %v1182
          %1575 = vmatmul.mubr.f32.gmra.mrb[0].mxu0 %v1181
          %v1576 = vpop.f32.mrb[0].mxu0
          %v1577 = vadd.f32 %v1506, %v1576
          %v1578 = vpop.f32.mrb[0].mxu0
          %v1579 = vadd.f32 %v1508, %v1578
          %1580 = vdwg.mxu0
          %1581 = vmatprep.subr.mxu0 %v1186
          %1582 = vmatpush1.msra.mxu0 %v1185
          %1583 = vmatprep.subr.mxu0 %v1190
          %1584 = vmatpush1.msra.mxu0 %v1189
          %1585 = vmatprep.subr.mxu0 %v1194
          %1586 = vmatpush1.msra.mxu0 %v1193
          %1587 = vmatprep.subr.mxu0 %v1198
          %1588 = vmatpush1.msra.mxu0 %v1197
          %1589 = vmatprep.subr.mxu0 %v1202
          %1590 = vmatpush1.msra.mxu0 %v1201
          %1591 = vmatprep.subr.mxu0 %v1206
          %1592 = vmatpush1.msra.mxu0 %v1205
          %1593 = vmatprep.subr.mxu0 %v1210
          %1594 = vmatpush1.msra.mxu0 %v1209
          %1595 = vmatprep.subr.mxu0 %v1214
          %1596 = vmatpush1.msra.mxu0 %v1213
          %1597 = vmatprep.subr.mxu0 %v1218
          %1598 = vmatpush1.msra.mxu0 %v1217
          %1599 = vmatprep.subr.mxu0 %v1222
          %1600 = vmatpush1.msra.mxu0 %v1221
          %1601 = vmatprep.subr.mxu0 %v1226
          %1602 = vmatpush1.msra.mxu0 %v1225
          %1603 = vmatprep.subr.mxu0 %v1230
          %1604 = vmatpush1.msra.mxu0 %v1229
          %1605 = vmatprep.subr.mxu0 %v1234
          %1606 = vmatpush1.msra.mxu0 %v1233
          %1607 = vmatprep.subr.mxu0 %v1238
          %1608 = vmatpush1.msra.mxu0 %v1237
          %1609 = vmatprep.subr.mxu0 %v1242
          %1610 = vmatpush1.msra.mxu0 %v1241
          %1611 = vmatprep.subr.mxu0 %v1246
          %1612 = vmatpush1.msra.mxu0 %v1245
          %1613 = vmatprep.subr.mxu0 %v1250
          %1614 = vmatpush1.msra.mxu0 %v1249
          %1615 = vmatprep.subr.mxu0 %v1254
          %1616 = vmatpush1.msra.mxu0 %v1253
          %1617 = vmatprep.subr.mxu0 %v1258
          %1618 = vmatpush1.msra.mxu0 %v1257
          %1619 = vmatprep.subr.mxu0 %v1262
          %1620 = vmatpush1.msra.mxu0 %v1261
          %1621 = vmatprep.subr.mxu0 %v1266
          %1622 = vmatpush1.msra.mxu0 %v1265
          %1623 = vmatprep.subr.mxu0 %v1270
          %1624 = vmatpush1.msra.mxu0 %v1269
          %1625 = vmatprep.subr.mxu0 %v1274
          %1626 = vmatpush1.msra.mxu0 %v1273
          %1627 = vmatprep.subr.mxu0 %v1278
          %1628 = vmatpush1.msra.mxu0 %v1277
          %1629 = vmatprep.subr.mxu0 %v1282
          %1630 = vmatpush1.msra.mxu0 %v1281
          %1631 = vmatprep.subr.mxu0 %v1286
          %1632 = vmatpush1.msra.mxu0 %v1285
          %1633 = vmatprep.subr.mxu0 %v1290
          %1634 = vmatpush1.msra.mxu0 %v1289
          %1635 = vmatprep.subr.mxu0 %v1294
          %1636 = vmatpush1.msra.mxu0 %v1293
          %1637 = vmatprep.subr.mxu0 %v1298
          %1638 = vmatpush1.msra.mxu0 %v1297
          %1639 = vmatprep.subr.mxu0 %v1302
          %1640 = vmatpush1.msra.mxu0 %v1301
          %1641 = vmatprep.subr.mxu0 %v1306
          %1642 = vmatpush1.msra.mxu0 %v1305
          %1643 = vmatprep.subr.mxu0 %v1310
          %1644 = vmatpush1.msra.mxu0 %v1309
          %1645 = vmatprep.mubr.f32.mxu0 %v1180
          %1646 = vmatmul.mubr.f32.gmra.mrb[0].mxu0 %v1179
          %v1647 = vpop.f32.mrb[0].mxu0
          %v1648 = vadd.f32 0.0, %v1647
          %v1649 = vpop.f32.mrb[0].mxu0
          %v1650 = vadd.f32 0.0, %v1649
          %1651 = vdwg.mxu0
          %1652 = vmatprep.subr.mxu0 %v1314
          %1653 = vmatpush1.msra.mxu0 %v1313
          %1654 = vmatprep.subr.mxu0 %v1318
          %1655 = vmatpush1.msra.mxu0 %v1317
          %1656 = vmatprep.subr.mxu0 %v1322
          %1657 = vmatpush1.msra.mxu0 %v1321
          %1658 = vmatprep.subr.mxu0 %v1326
          %1659 = vmatpush1.msra.mxu0 %v1325
          %1660 = vmatprep.subr.mxu0 %v1330
          %1661 = vmatpush1.msra.mxu0 %v1329
          %1662 = vmatprep.subr.mxu0 %v1334
          %1663 = vmatpush1.msra.mxu0 %v1333
          %1664 = vmatprep.subr.mxu0 %v1338
          %1665 = vmatpush1.msra.mxu0 %v1337
          %1666 = vmatprep.subr.mxu0 %v1342
          %1667 = vmatpush1.msra.mxu0 %v1341
          %1668 = vmatprep.subr.mxu0 %v1346
          %1669 = vmatpush1.msra.mxu0 %v1345
          %1670 = vmatprep.subr.mxu0 %v1350
          %1671 = vmatpush1.msra.mxu0 %v1349
          %1672 = vmatprep.subr.mxu0 %v1354
          %1673 = vmatpush1.msra.mxu0 %v1353
          %1674 = vmatprep.subr.mxu0 %v1358
          %1675 = vmatpush1.msra.mxu0 %v1357
          %1676 = vmatprep.subr.mxu0 %v1362
          %1677 = vmatpush1.msra.mxu0 %v1361
          %1678 = vmatprep.subr.mxu0 %v1366
          %1679 = vmatpush1.msra.mxu0 %v1365
          %1680 = vmatprep.subr.mxu0 %v1370
          %1681 = vmatpush1.msra.mxu0 %v1369
          %1682 = vmatprep.subr.mxu0 %v1374
          %1683 = vmatpush1.msra.mxu0 %v1373
          %1684 = vmatprep.subr.mxu0 %v1378
          %1685 = vmatpush1.msra.mxu0 %v1377
          %1686 = vmatprep.subr.mxu0 %v1382
          %1687 = vmatpush1.msra.mxu0 %v1381
          %1688 = vmatprep.subr.mxu0 %v1386
          %1689 = vmatpush1.msra.mxu0 %v1385
          %1690 = vmatprep.subr.mxu0 %v1390
          %1691 = vmatpush1.msra.mxu0 %v1389
          %1692 = vmatprep.subr.mxu0 %v1394
          %1693 = vmatpush1.msra.mxu0 %v1393
          %1694 = vmatprep.subr.mxu0 %v1398
          %1695 = vmatpush1.msra.mxu0 %v1397
          %1696 = vmatprep.subr.mxu0 %v1402
          %1697 = vmatpush1.msra.mxu0 %v1401
          %1698 = vmatprep.subr.mxu0 %v1406
          %1699 = vmatpush1.msra.mxu0 %v1405
          %1700 = vmatprep.subr.mxu0 %v1410
          %1701 = vmatpush1.msra.mxu0 %v1409
          %1702 = vmatprep.subr.mxu0 %v1414
          %1703 = vmatpush1.msra.mxu0 %v1413
          %1704 = vmatprep.subr.mxu0 %v1418
          %1705 = vmatpush1.msra.mxu0 %v1417
          %1706 = vmatprep.subr.mxu0 %v1422
          %1707 = vmatpush1.msra.mxu0 %v1421
          %1708 = vmatprep.subr.mxu0 %v1426
          %1709 = vmatpush1.msra.mxu0 %v1425
          %1710 = vmatprep.subr.mxu0 %v1430
          %1711 = vmatpush1.msra.mxu0 %v1429
          %1712 = vmatprep.subr.mxu0 %v1434
          %1713 = vmatpush1.msra.mxu0 %v1433
          %1714 = vmatprep.subr.mxu0 %v1438
          %1715 = vmatpush1.msra.mxu0 %v1437
          %1716 = vmatprep.mubr.f32.mxu0 %v1182
          %1717 = vmatmul.mubr.f32.gmra.mrb[0].mxu0 %v1181
          %v1718 = vpop.f32.mrb[0].mxu0
          %v1719 = vadd.f32 %v1648, %v1718
          %v1720 = vpop.f32.mrb[0].mxu0
          %v1721 = vadd.f32 %v1650, %v1720
          %1722 = vdwg.mxu0
          %v1723 = vmul.f32 %v1029, %v1029
          %v1724 = vmul.f32 %v1031, %v1031
          %v1725 = vmul.f32 %v1171, %v1171
          %v1726 = vmul.f32 %v1173, %v1173
          %v1727 = vadd.f32 %v1723, %v1724
          %v1728 = vadd.f32 %v1727, %v1725
          %v1729 = vadd.f32 %v1728, %v1726
          %1730 = vadd.xlane.f32.xlu0 %v1729
          %v1731 = vpop.xlane.xlu0 %1730
          %v1732 = vmul.f32 %v1577, %v1577
          %v1733 = vmul.f32 %v1579, %v1579
          %v1734 = vmul.f32 %v1719, %v1719
          %v1735 = vmul.f32 %v1721, %v1721
          %v1736 = vadd.f32 %v1732, %v1733
          %v1737 = vadd.f32 %v1736, %v1734
          %v1738 = vadd.f32 %v1737, %v1735
          %1739 = vadd.xlane.f32.xlu0 %v1738
          %v1740 = vpop.xlane.xlu0 %1739
          %v1741 = vmul.f32 %v1029, %v1577
          %v1742 = vmul.f32 %v1031, %v1579
          %v1743 = vmul.f32 %v1171, %v1719
          %v1744 = vmul.f32 %v1173, %v1721
          %v1745 = vadd.f32 %v1741, %v1742
          %v1746 = vadd.f32 %v1745, %v1743
          %v1747 = vadd.f32 %v1746, %v1744
          %1748 = vadd.xlane.f32.xlu0 %v1747
          %v1749 = vpop.xlane.xlu0 %1748
          %v1750 = vmax.f32 %v1731, 1e-24
          %v1751 = vrsqrt.pop %v1750
          %v1752 = vmax.f32 %v1740, 1e-24
          %v1753 = vrsqrt.pop %v1752
          %v1754 = vmul.f32 %v1751, %v1753
          %v1755 = vmul.f32 %v1749, %v1754
          %s1756 = sld [smem:[#allocation3]]
          %v1757 = vstv %s1756
          %v1758 = vmul.f32 %v1755, %v1757
          %vm1759 = vcmask 7168
          %1760 = vst.msk [vmem:[%s311] sm:$0xff] %vm1759, %v1758
        $region64: #{tpu_custom_call.1} parent=39 // pred_fallthru
          _
        %p1761 = scmp.lt.s32.totalorder %s26, 0
        %s1762 = scalar_select %p1761, %s26, 0
        %s1763 = smul.addr %s1762, 8
        %s1764 = scalar_lea.vmem %s5, %s1763
        // Predicated region
        $region65: #{tpu_custom_call.1} parent=39 // pred_check
          %p1765 = pneg %p169
        $region66: #{tpu_custom_call.1} parent=39 // pred_check_branch
          %1767 = sbr.rel (%p1765) target = $region68
        $region67: #{tpu_custom_call.1} parent=39 // pred_region
          _
        $region68: #{tpu_custom_call.1} parent=39 // pred_fallthru
          _
        // Predicated region
        $region69: #{tpu_custom_call.1} parent=39 // pred_check
          %p1768 = pneg %p169
        $region70: #{tpu_custom_call.1} parent=39 // pred_check_branch
          %1770 = sbr.rel (%p1768) target = $region72
        $region71: #{tpu_custom_call.1} parent=39 // pred_region
          %p1771 = scmp.lt.s32.totalorder %s26, 0
          %s1772 = scalar_select %p1771, %s26, 0
          %s1773 = smul.addr %s1772, 8
          %s1774 = scalar_lea.vmem %s5, %s1773
        $region72: #{tpu_custom_call.1} parent=39 // pred_fallthru
          _
      $region40: #{tpu_custom_call.1} parent=5 // pred_fallthru
        _
      %p1775 = scmp.le.s32.totalorder 2, %s17
      // Predicated region
      $region73: #{tpu_custom_call.1} parent=5 // pred_check
        %p1776 = pneg %p1775
      $region74: #{tpu_custom_call.1} parent=5 // pred_check_branch
        %1778 = sbr.rel (%p1776) target = $region76
      $region75: #{tpu_custom_call.1} parent=5 // pred_region
        %s1779 = ssub.s32 %s17, 2
      $region76: #{tpu_custom_call.1} parent=5 // pred_fallthru
        _
    $region6: #{tpu_custom_call.1} parent=1 // loop_footer
      %s21 = sadd.s32 1, %s17
    $region7: #{tpu_custom_call.1} parent=1 // loop_footer_branch
      %16 = sbr.rel target = $region3
    $region8: #{tpu_custom_call.1} parent=1 // loop_exit
      _
    %1780 = vsyncpa [#allocation5], 1
    %s1781 = scalar_lea.sflag [#allocation5], 1
    %1782 = vsyncpa %s1781, 1
    %1783 = vsyncpa [#allocation7], 1
    %s1784 = scalar_lea.sflag [#allocation7], 1
    %1785 = vsyncpa %s1784, 1
    %1786 = vsyncpa [#allocation10], 1

</llo_original>
